<compile_context>
chip_gen: v7x
topology: tpu7x:2x2x1
jax: 0.10.0
libtpu: 0.0.40
codegen_flags: <defaults>
</compile_context>

<pallas_src>
import functools
import math

import jax
import jax.numpy as jnp
from jax.experimental import pallas as pl
from jax.experimental.pallas import tpu as pltpu

_BN_EPS = 1e-5
_BN_SCALE = 1.0 / math.sqrt(1.0 + _BN_EPS)   # eval BN: gamma=1, beta=0, mean=0, var=1
_ACT_DTYPE = jnp.bfloat16                    # inter-layer activation / MXU operand dtype


# ----------------------------------------------------------------------------
# Per-generation VMEM budget (v7x has only 64 MiB per TensorCore).
# ----------------------------------------------------------------------------
@functools.lru_cache(maxsize=None)
def _vmem_budget():
    cap = 64 * 1024 * 1024          # conservative default = v7x physical VMEM/TC
    try:
        cap = int(getattr(pltpu.get_tpu_info(), "vmem_capacity_bytes", cap))
    except Exception:
        pass
    # leave headroom: 3/4 of physical, capped at 100 MiB
    return max(32 * 1024 * 1024, min((cap * 3) // 4, 100 * 1024 * 1024))


def _compiler_params(dims):
    return pltpu.CompilerParams(dimension_semantics=dims,
                                vmem_limit_bytes=_vmem_budget())


# ----------------------------------------------------------------------------
# Pallas kernels
# ----------------------------------------------------------------------------
def _matmul_kernel(x_ref, w_ref, o_ref, *, relu):
    # (tm,K)bf16 @ (K,tn)bf16 -> f32 acc -> (ReLU) -> store
    out = jnp.dot(x_ref[...], w_ref[...], preferred_element_type=jnp.float32)
    if relu:
        out = jnp.maximum(out, 0.0)
    o_ref[...] = out.astype(o_ref.dtype)


def _matmul_res_kernel(x_ref, w_ref, r_ref, o_ref, *, relu):
    # Same, fusing the Bottleneck residual add before the ReLU.
    out = jnp.dot(x_ref[...], w_ref[...], preferred_element_type=jnp.float32)
    out = out + r_ref[...].astype(jnp.float32)
    if relu:
        out = jnp.maximum(out, 0.0)
    o_ref[...] = out.astype(o_ref.dtype)


def _conv_taps_kernel(x_ref, w_ref, o_ref, *, k, wp, l_out, relu):
    # Stride-1 k x k conv over one image, flattened spatial.
    #   x_ref: (1, (Hp+1)*Wp, Cin)  padded image, flattened row-major
    #   w_ref: (k*k, Cin, Cout)     BN-folded weights
    #   o_ref: (1, Ho*Wp, Cout)     full-width rows (Wo valid + k-1 junk cols)
    cout = w_ref.shape[-1]
    acc = jnp.zeros((l_out, cout), jnp.float32)
    for dh in range(k):
        for dw in range(k):
            off = dh * wp + dw                      # static row offset
            xt = x_ref[0, pl.ds(off, l_out), :]     # in-VMEM window, no HBM copy
            acc = acc + jnp.dot(xt, w_ref[dh * k + dw],
                                preferred_element_type=jnp.float32)
    if relu:
        acc = jnp.maximum(acc, 0.0)
    o_ref[0] = acc.astype(o_ref.dtype)


def _avgpool_kernel(x_ref, o_ref, *, inv):
    # x: (1, Hs, W, C) -> mean over (Hs, W) -> (1, 1, C)
    x = x_ref[0].astype(jnp.float32)          # (Hs, W, C)
    s = jnp.sum(x, axis=1)                    # reduce W first (lane-preserving)
    s = jnp.sum(s, axis=0, keepdims=True)     # (1, C)
    o_ref[0] = (s * inv).astype(o_ref.dtype)


# ----------------------------------------------------------------------------
# Matmul wrapper (shared by 1x1 convs and the im2col fallback)
# ----------------------------------------------------------------------------
def _pick_tile_m(m, k, cout, has_res, budget):
    m8 = max(8, ((m + 7) // 8) * 8)
    for tm in (1024, 512, 256, 128, 64, 32, 16, 8):
        if tm > m8:
            continue
        est = 2 * tm * k * 2 + 2 * k * cout * 2 + 2 * tm * cout * 2
        if has_res:
            est += 2 * tm * cout * 2
        if est <= budget // 2:
            return tm
    return 8


def _pick_tile_n(cout, grid_m):
    # Give v7x's two TensorCores >=2 parallel steps on tiny-M deep layers.
    if grid_m == 1 and cout >= 256 and cout % 256 == 0:
        return cout // 2
    return cout


def _matmul_bn(xm, wm, *, relu, residual=None, out_dtype=_ACT_DTYPE):
    """xm: (M, K) bf16, wm: (K, Cout) bf16 (BN scale already folded in)."""
    m, k = xm.shape
    cout = wm.shape[1]
    budget = _vmem_budget()
    tm = _pick_tile_m(m, k, cout, residual is not None, budget)
    grid_m = pl.cdiv(m, tm)
    tn = _pick_tile_n(cout, grid_m)
    grid_n = pl.cdiv(cout, tn)

    in_specs = [
        pl.BlockSpec((tm, k), lambda i, j: (i, 0)),
        pl.BlockSpec((k, tn), lambda i, j: (0, j)),
    ]
    args = [xm, wm]
    if residual is not None:
        in_specs.append(pl.BlockSpec((tm, tn), lambda i, j: (i, j)))
        args.append(residual)
        kernel = functools.partial(_matmul_res_kernel, relu=relu)
    else:
        kernel = functools.partial(_matmul_kernel, relu=relu)

    return pl.pallas_call(
        kernel,
        out_shape=jax.ShapeDtypeStruct((m, cout), out_dtype),
        grid=(grid_m, grid_n),
        in_specs=in_specs,
        out_specs=pl.BlockSpec((tm, tn), lambda i, j: (i, j)),
        compiler_params=_compiler_params(("parallel", "parallel")),
    )(*args)


# ----------------------------------------------------------------------------
# Convolution wrappers
# ----------------------------------------------------------------------------
def _conv_taps(x, wm, *, k, pad, relu, ho, wo):
    """Stride-1 k x k conv with in-kernel tap accumulation (no HBM im2col).

    Returns None if the whole-image block would not fit the VMEM budget, in
    which case the caller falls back to the im2col path."""
    n, h, w, cin = x.shape
    cout = wm.shape[-1]
    hp = h + 2 * pad
    wp = w + 2 * pad
    l_out = ho * wp                 # wo valid + (k-1) junk columns per row
    l_flat = (hp + 1) * wp          # one extra zero row so every tap window fits

    est = (2 * l_flat * cin * 2 + 2 * k * k * cin * cout * 2
           + 2 * l_out * cout * 2 + l_out * cout * 4)
    if est > (_vmem_budget() * 3) // 5:
        return None

    xpad = jnp.pad(x, ((0, 0), (pad, pad + 1), (pad, pad), (0, 0)))
    xflat = xpad.reshape(n, l_flat, cin)            # free contiguous reshape
    wr = wm.reshape(k * k, cin, cout)               # free contiguous reshape

    out = pl.pallas_call(
        functools.partial(_conv_taps_kernel, k=k, wp=wp, l_out=l_out, relu=relu),
        out_shape=jax.ShapeDtypeStruct((n, l_out, cout), _ACT_DTYPE),
        grid=(n,),
        in_specs=[
            pl.BlockSpec((1, l_flat, cin), lambda i: (i, 0, 0)),
            pl.BlockSpec((k * k, cin, cout), lambda i: (0, 0, 0)),
        ],
        out_specs=pl.BlockSpec((1, l_out, cout), lambda i: (i, 0, 0)),
        compiler_params=_compiler_params(("parallel",)),
    )(xflat, wr)
    # Crop the (k-1) wrap-around garbage columns per output row.
    return out.reshape(n, ho, wp, cout)[:, :, :wo, :]


def _im2col(x, k, stride, pad, ho, wo):
    """Fallback patch extraction for stride>=2 convs (bounded blow-up)."""
    n, h, w, c = x.shape
    xp = jnp.pad(x, ((0, 0), (pad, pad), (pad, pad), (0, 0))) if pad else x
    taps = []
    for dh in range(k):
        for dw in range(k):
            taps.append(xp[:, dh:dh + stride * (ho - 1) + 1:stride,
                           dw:dw + stride * (wo - 1) + 1:stride, :])
    p = jnp.stack(taps, axis=3)                     # (N, Ho, Wo, k*k, C)
    return p.reshape(n * ho * wo, k * k * c)


def conv_bn(x, w, *, k, stride, pad, relu, residual=None):
    """Fused Conv2d(no bias) + BatchNorm(eval, identity stats) [+res] [+ReLU].
    x: (N,H,W,Cin) bf16 NHWC, w: (k,k,Cin,Cout) f32."""
    n, h, wdt, cin = x.shape
    cout = w.shape[-1]
    ho = (h + 2 * pad - k) // stride + 1
    wo = (wdt + 2 * pad - k) // stride + 1
    wm = (w * _BN_SCALE).astype(_ACT_DTYPE)         # BN scale folded into weights

    if k == 1:
        # 1x1 conv: strided decimation (if any) + free reshape, no im2col.
        xs = x[:, ::stride, ::stride, :] if stride > 1 else x
        xm = xs.reshape(n * ho * wo, cin)
        rm = None if residual is None else residual.reshape(n * ho * wo, cout)
        out = _matmul_bn(xm, wm.reshape(cin, cout), relu=relu, residual=rm)
        return out.reshape(n, ho, wo, cout)

    if stride == 1 and residual is None:
        out = _conv_taps(x, wm, k=k, pad=pad, relu=relu, ho=ho, wo=wo)
        if out is not None:
            return out

    # stride>=2 k>=2 (7x7 stem + three 3x3/s2 convs): bounded im2col fallback.
    xm = _im2col(x, k, stride, pad, ho, wo).astype(_ACT_DTYPE)
    rm = None if residual is None else residual.reshape(n * ho * wo, cout)
    out = _matmul_bn(xm, wm.reshape(k * k * cin, cout), relu=relu, residual=rm)
    return out.reshape(n, ho, wo, cout)


# ----------------------------------------------------------------------------
# Pooling
# ----------------------------------------------------------------------------
def maxpool_3x3_s2_p1(x):
    """MaxPool2d(3, stride=2, padding=1) on NHWC. Done as fused XLA slices +
    max (no standalone kernel => no 9x HBM round-trip; per perf review)."""
    n, h, w, c = x.shape
    xp = jnp.pad(x, ((0, 0), (1, 1), (1, 1), (0, 0)),
                 constant_values=float("-inf"))
    ho = (h - 1) // 2 + 1
    wo = (w - 1) // 2 + 1
    out = None
    for dh in range(3):
        for dw in range(3):
            tap = xp[:, dh:dh + 2 * (ho - 1) + 1:2,
                     dw:dw + 2 * (wo - 1) + 1:2, :]
            out = tap if out is None else jnp.maximum(out, tap)
    return out


def avgpool_parts(x, pairs):
    """Batched AdaptiveAvgPool2d((1,1)) over height slices of x (NHWC).
    Returns (N, n_parts, C) float32 with a single pallas_call when the
    slices are equal (grid over N * n_parts)."""
    n, h, w, c = x.shape
    lens = [b - a for a, b in pairs]
    nparts = len(pairs)
    if len(set(lens)) == 1 and pairs[0][0] == 0 and pairs[-1][1] == h:
        hs = lens[0]
        xr = x.reshape(n * nparts, hs, w, c)        # free contiguous reshape
        out = pl.pallas_call(
            functools.partial(_avgpool_kernel, inv=1.0 / float(hs * w)),
            out_shape=jax.ShapeDtypeStruct((n * nparts, 1, c), jnp.float32),
            grid=(n * nparts,),
            in_specs=[pl.BlockSpec((1, hs, w, c), lambda i: (i, 0, 0, 0))],
            out_specs=pl.BlockSpec((1, 1, c), lambda i: (i, 0, 0)),
            compiler_params=_compiler_params(("parallel",)),
        )(xr)
        return out.reshape(n, nparts, c)
    # Unequal tail slice: fall back to per-part calls.
    parts = [avgpool_parts(x[:, a:b, :, :], [(0, b - a)])[:, 0, :]
             for (a, b) in pairs]
    return jnp.stack(parts, axis=1)


# ----------------------------------------------------------------------------
# SfeNet structure (Bottleneck / layers / shuffles)
# ----------------------------------------------------------------------------
def _bottleneck(x, blk):
    stride = blk["stride"]
    if "wd" in blk:
        residual = conv_bn(x, blk["wd"], k=1, stride=stride, pad=0, relu=False)
    else:
        residual = x
    out = conv_bn(x, blk["w1"], k=1, stride=1, pad=0, relu=True)
    out = conv_bn(out, blk["w2"], k=3, stride=stride, pad=1, relu=True)
    out = conv_bn(out, blk["w3"], k=1, stride=1, pad=0, relu=True,
                  residual=residual)
    return out


def _run_layer(x, blocks):
    for blk in blocks:
        x = _bottleneck(x, blk)
    return x


def _index_pair_list(height, permu):
    n = len(permu)
    hps = height // n
    pairs = [(hps * i, hps * (i + 1)) for i in range(n - 1)]
    pairs.append((hps * (n - 1), height))
    return pairs


def _height_shuffle(x, permu):
    h = x.shape[1]
    pairs = _index_pair_list(h, permu)
    shuffled = [pairs[permu[i]] for i in range(len(permu))]
    return jnp.concatenate([x[:, a:b, :, :] for (a, b) in shuffled], axis=1)


def _recover_shuffle(x, permu):
    dic = {permu[i]: i for i in range(len(permu))}
    recover = [dic[k] for k in sorted(dic.keys())]
    return _height_shuffle(x, recover)


def sfenet_forward(params, x_nchw, p2, p3):
    """x_nchw: (N, 3, H, W) like PyTorch; p2/p3: permutation tuples."""
    x = jnp.transpose(x_nchw, (0, 2, 3, 1)).astype(_ACT_DTYPE)   # -> NHWC bf16

    x = conv_bn(x, params["conv1"], k=7, stride=2, pad=3, relu=True)
    x = maxpool_3x3_s2_p1(x)
    x = _run_layer(x, params["layer1"])
    x = _run_layer(x, params["layer2"])
    b13 = _run_layer(x, params["layer3"])

    b1 = _run_layer(b13, params["layer4"])
    b1 = avgpool_parts(b1, [(0, b1.shape[1])])[:, 0, :]          # (N, 2048)
    b1 = b1[:, :, None, None]                                    # (N, 2048, 1, 1)

    b2 = _height_shuffle(x, p2)
    b2 = _run_layer(b2, params["b2_layer3"])
    b2 = _run_layer(b2, params["b2_layer4"])
    b2 = _recover_shuffle(b2, p2)
    pairs2 = _index_pair_list(b2.shape[1], p2)
    f2 = avgpool_parts(b2, pairs2)                               # (N, n2, 2048)
    parts2 = [f2[:, i, :] for i in range(len(pairs2))]

    b3 = _height_shuffle(b13, p3)
    b3 = _run_layer(b3, params["b3_layer4"])
    b3 = _recover_shuffle(b3, p3)
    pairs3 = _index_pair_list(b3.shape[1], p3)
    f3 = avgpool_parts(b3, pairs3)
    parts3 = [f3[:, i, :] for i in range(len(pairs3))]

    return b1, parts2, parts3


# ----------------------------------------------------------------------------
# Deterministic parameter init (kaiming_normal_, fan_out, relu)
# ----------------------------------------------------------------------------
def _kaiming_conv(key, k, cin, cout):
    fan_out = cout * k * k
    std = math.sqrt(2.0 / fan_out)
    return jax.random.normal(key, (k, k, cin, cout), jnp.float32) * std


def _make_layer_params(key, inplanes, planes, blocks, stride):
    blks = []
    for b in range(blocks):
        s = stride if b == 0 else 1
        key, k1, k2, k3, k4 = jax.random.split(key, 5)
        blk = {
            "stride": s,
            "w1": _kaiming_conv(k1, 1, inplanes, planes),
            "w2": _kaiming_conv(k2, 3, planes, planes),
            "w3": _kaiming_conv(k3, 1, planes, planes * 4),
        }
        if b == 0 and (stride != 1 or inplanes != planes * 4):
            blk["wd"] = _kaiming_conv(k4, 1, inplanes, planes * 4)
        blks.append(blk)
        inplanes = planes * 4
    return blks, inplanes, key


def init_sfenet(key, layers=(3, 4, 6, 3)):
    params = {}
    key, k0 = jax.random.split(key)
    params["conv1"] = _kaiming_conv(k0, 7, 3, 64)
    inplanes = 64
    params["layer1"], inplanes, key = _make_layer_params(key, inplanes, 64, layers[0], 1)
    params["layer2"], inplanes, key = _make_layer_params(key, inplanes, 128, layers[1], 2)
    params["layer3"], inplanes, key = _make_layer_params(key, inplanes, 256, layers[2], 2)
    params["layer4"], inplanes, key = _make_layer_params(key, inplanes, 512, layers[3], 1)
    inplanes = 512
    params["b2_layer3"], inplanes, key = _make_layer_params(key, inplanes, 256, layers[2], 2)
    params["b2_layer4"], inplanes, key = _make_layer_params(key, inplanes, 512, layers[3], 1)
    inplanes = 1024
    params["b3_layer4"], inplanes, key = _make_layer_params(key, inplanes, 512, layers[3], 1)
    return params


# ----------------------------------------------------------------------------
if __name__ == "__main__":
    key = jax.random.PRNGKey(0)
    kp, kx = jax.random.split(key)

    # Small-depth SfeNet for the demo (the default ResNet-50 depths [3,4,6,3]
    # are supported by the same code, just more blocks / compile time).
    params = init_sfenet(kp, layers=(1, 1, 1, 1))

    # Input consistent with the module: NCHW, 3 channels, enough spatial for
    # the five stride-2 stages plus the height splits.
    x = jax.random.normal(kx, (2, 3, 64, 64), jnp.float32)
    p2 = (1, 0)   # height-shuffle permutation for branch 2
    p3 = (1, 0)   # height-shuffle permutation for branch 3

    b1, parts2, parts3 = sfenet_forward(params, x, p2, p3)
    jax.block_until_ready((b1, parts2, parts3))

    assert b1.shape == (2, 2048, 1, 1)
    assert len(parts2) == len(p2) and all(p.shape == (2, 2048) for p in parts2)
    assert len(parts3) == len(p3) and all(p.shape == (2, 2048) for p in parts3)
    assert all(bool(jnp.all(jnp.isfinite(t))) for t in [b1] + parts2 + parts3)

    print("KERNEL_OK")
</pallas_src>

<mosaic_0001>
module attributes {stable_mosaic.version = 11 : i64} {
  func.func @_matmul_kernel(%arg0: i32, %arg1: i32, %arg2: memref<1024x147xbf16, #tpu.memory_space<vmem>>, %arg3: memref<147x64xbf16, #tpu.memory_space<vmem>>, %arg4: memref<1024x64xbf16, #tpu.memory_space<vmem>>) attributes {dimension_semantics = [#tpu.dimension_semantics<parallel>, #tpu.dimension_semantics<parallel>], iteration_bounds = array<i64: 2, 1>, scalar_prefetch = 0 : i64, scratch_operands = 0 : i64, tpu.core_type = #tpu.core_type<tc>, window_params = [{transform_indices = @transform_0, window_bounds = array<i64: 1024, 147>}, {transform_indices = @transform_1, window_bounds = array<i64: 147, 64>}, {transform_indices = @transform_2, window_bounds = array<i64: 1024, 64>}]} {
    %c0 = arith.constant 0 : index
    %c0_0 = arith.constant 0 : index
    %0 = vector.load %arg2[%c0, %c0_0] : memref<1024x147xbf16, #tpu.memory_space<vmem>>, vector<1024x147xbf16>
    %c0_1 = arith.constant 0 : index
    %c0_2 = arith.constant 0 : index
    %1 = vector.load %arg3[%c0_1, %c0_2] : memref<147x64xbf16, #tpu.memory_space<vmem>>, vector<147x64xbf16>
    %cst = arith.constant dense<0.000000e+00> : vector<1024x64xf32>
    %2 = tpu.matmul %0, %1, %cst {dimension_numbers = #tpu.dot_dimension_numbers<[1], [0], [0], [1], [0, 0, 1, 1], [], []>} : vector<1024x147xbf16>, vector<147x64xbf16>, vector<1024x64xf32> -> vector<1024x64xf32>
    %cst_3 = arith.constant 0.000000e+00 : f32
    %3 = vector.broadcast %cst_3 : f32 to vector<1024x64xf32>
    %4 = arith.maximumf %2, %3 : vector<1024x64xf32>
    %5 = arith.truncf %4 : vector<1024x64xf32> to vector<1024x64xbf16>
    %c0_4 = arith.constant 0 : index
    %c0_5 = arith.constant 0 : index
    %6 = vector.load %arg4[%c0_4, %c0_5] : memref<1024x64xbf16, #tpu.memory_space<vmem>>, vector<1024x64xbf16>
    tpu.vector_store %arg4[%c0_4, %c0_5], %5 {strides = array<i32>} : memref<1024x64xbf16, #tpu.memory_space<vmem>>, vector<1024x64xbf16>,
    return
  }
  func.func @transform_0(%arg0: i32, %arg1: i32) -> (i32, i32) {
    %c0_i32 = arith.constant 0 : i32
    %c0_i32_0 = arith.constant 0 : i32
    return %arg0, %c0_i32 : i32, i32
  }
  func.func @transform_1(%arg0: i32, %arg1: i32) -> (i32, i32) {
    %c0_i32 = arith.constant 0 : i32
    %c0_i32_0 = arith.constant 0 : i32
    return %c0_i32, %arg1 : i32, i32
  }
  func.func @transform_2(%arg0: i32, %arg1: i32) -> (i32, i32) {
    %c0_i32 = arith.constant 0 : i32
    return %arg0, %arg1 : i32, i32
  }
}

</mosaic_0001>

<llo_original>
// kernel: tpu_custom_call.1
$region0: #{tpu_custom_call.1}
  #allocation0 [shape = 'u32[]', space=smem, size = 0x4, offset = 0x4, fixed_abs, tag = 'smem constant byte address 0x4 - core index']
  #allocation1 [shape = 'u32[144,128]{1,0:T(1,128)}', space=vmem, size = 0x12000, scoped, tag = 'internal scratch']
  %s0 = inlined_call_operand.vmem [shape: bf16[2048,147], index: 0, kind: input, shape index: {}]
  %s1 = inlined_call_operand.vmem [shape: bf16[147,64], index: 1, kind: input, shape index: {}]
  %s2 = inlined_call_operand.vmem [shape: bf16[2048,64], index: 2, kind: output, shape index: {}]
  %s3 = sld [smem:[#allocation0]]
  $region41: #{tpu_custom_call.1} parent=0
    _
  %s5 = ssub.s32 1, %s3
  %s6 = scalar_select 0, %s5, %s3
  loop: start=0, step=1, limit=4
  $region2: #{tpu_custom_call.1} parent=0 // loop_pre_header
    _
  $region3: #{tpu_custom_call.1} parent=0 // loop_header
    %s8 = sphi 0, %s12
    %p9 = scmp.ge.s32.totalorder %s8, 4
    %s15 = sphi 0, %s27
    %s16 = sphi 0, %s23
    %s17 = sphi 0, %s15
    %s18 = sphi 0, %s16
    %s19 = sphi 0, %s17
    %s20 = sphi 0, %s18
    %s30 = sphi 0, %s32
    %s33 = sphi 0, %s30
    %s34 = sphi 0, %s33
    %s50 = sphi 0, %s34
    %s56 = sphi 0, %s58
    %s59 = sphi 0, %s56
    %s60 = sphi 0, %s59
    %s76 = sphi 0, %s60
    %s84 = sphi 0, %s86
    %s87 = sphi 0, %s84
    %s88 = sphi 0, %s87
    %s104 = sphi 0, %s88
  $region4: #{tpu_custom_call.1} parent=0 // loop_header_branch
    %11 = sbr.rel (%p9) target = $region8
  $region5: #{tpu_custom_call.1} parent=0 // loop_body
    %s13 = ssub.s32 %s8, 1
    %s14 = ssub.s32 %s8, 2
    %s21 = sadd.s32 1, %s16
    %p22 = scmp.ge.s32.totalorder %s21, 1
    %s23 = scalar_select %p22, 0, %s21
    %s24 = sadd.s32 1, %s15
    %s25 = scalar_select %p22, %s24, %s15
    %p26 = scmp.ge.s32.totalorder %s25, 2
    %s27 = scalar_select %p26, 0, %s25
    %s28 = ssub.s32 %s15, %s27
    %p29 = scmp.eq.s32.totalorder %s28, 0
    %s31 = sadd.s32 %s30, 1
    %s32 = scalar_select %p29, %s30, %s31
    %p35 = pneg %p29
    %p36 = scmp.eq.s32.totalorder %s8, 1
    %p37 = por %p35, %p36
    %p38 = scmp.ne.s32.totalorder %s30, %s33
    %p39 = scmp.eq.s32.totalorder %s8, 0
    %p40 = por %p38, %p39
    %p41 = scmp.ne.s32.totalorder %s30, %s33
    %p42 = scmp.eq.s32.totalorder %s13, 1
    %p43 = por %p41, %p42
    %p44 = scmp.ne.s32.totalorder %s33, %s34
    %p45 = scmp.eq.s32.totalorder %s13, 0
    %p46 = por %p44, %p45
    %p47 = scmp.ne.s32.totalorder %s33, %s34
    %p48 = scmp.eq.s32.totalorder %s14, 1
    %p49 = por %p47, %p48
    %p51 = scmp.ne.s32.totalorder %s34, %s50
    %p52 = scmp.eq.s32.totalorder %s14, 0
    %p53 = por %p51, %p52
    %s54 = ssub.s32 %s16, %s23
    %p55 = scmp.eq.s32.totalorder %s54, 0
    %s57 = sadd.s32 %s56, 1
    %s58 = scalar_select %p55, %s56, %s57
    %p61 = pneg %p55
    %p62 = scmp.eq.s32.totalorder %s8, 1
    %p63 = por %p61, %p62
    %p64 = scmp.ne.s32.totalorder %s56, %s59
    %p65 = scmp.eq.s32.totalorder %s8, 0
    %p66 = por %p64, %p65
    %p67 = scmp.ne.s32.totalorder %s56, %s59
    %p68 = scmp.eq.s32.totalorder %s13, 1
    %p69 = por %p67, %p68
    %p70 = scmp.ne.s32.totalorder %s59, %s60
    %p71 = scmp.eq.s32.totalorder %s13, 0
    %p72 = por %p70, %p71
    %p73 = scmp.ne.s32.totalorder %s59, %s60
    %p74 = scmp.eq.s32.totalorder %s14, 1
    %p75 = por %p73, %p74
    %p77 = scmp.ne.s32.totalorder %s60, %s76
    %p78 = scmp.eq.s32.totalorder %s14, 0
    %p79 = por %p77, %p78
    %s80 = ssub.s32 %s15, %s27
    %s81 = ssub.s32 %s16, %s23
    %s82 = sor.u32 %s80, %s81
    %p83 = scmp.eq.s32.totalorder %s82, 0
    %s85 = sadd.s32 %s84, 1
    %s86 = scalar_select %p83, %s84, %s85
    %p89 = pneg %p83
    %p90 = scmp.eq.s32.totalorder %s8, 1
    %p91 = por %p89, %p90
    %p92 = scmp.ne.s32.totalorder %s84, %s87
    %p93 = scmp.eq.s32.totalorder %s8, 0
    %p94 = por %p92, %p93
    %p95 = scmp.ne.s32.totalorder %s84, %s87
    %p96 = scmp.eq.s32.totalorder %s13, 1
    %p97 = por %p95, %p96
    %p98 = scmp.ne.s32.totalorder %s87, %s88
    %p99 = scmp.eq.s32.totalorder %s13, 0
    %p100 = por %p98, %p99
    %p101 = scmp.ne.s32.totalorder %s87, %s88
    %p102 = scmp.eq.s32.totalorder %s14, 1
    %p103 = por %p101, %p102
    %p105 = scmp.ne.s32.totalorder %s88, %s104
    %p106 = scmp.eq.s32.totalorder %s14, 0
    %p107 = por %p105, %p106
    %p108 = scmp.le.s32.totalorder 1, %s8
    %p109 = scmp.lt.s32.totalorder %s8, 3
    %p110 = pnand %p108, %p109
    %p111 = pneg %p110
    // Predicated region
    $region9: #{tpu_custom_call.1} parent=5 // pred_check
      _
    $region10: #{tpu_custom_call.1} parent=5 // pred_check_branch
      %113 = sbr.rel (%p110) target = $region12
    $region11: #{tpu_custom_call.1} parent=5 // pred_region
      %s114 = ssub.s32 %s8, 1
      // Predicated region
      $region13: #{tpu_custom_call.1} parent=11 // pred_check
        %p115 = pneg %p72
      $region14: #{tpu_custom_call.1} parent=11 // pred_check_branch
        %117 = sbr.rel (%p115) target = $region16
      $region15: #{tpu_custom_call.1} parent=11 // pred_region
        %p118 = scmp.lt.s32.totalorder %s18, 0
        %s119 = scalar_select %p118, %s18, 0
        %s120 = smul.addr %s119, 4
        %s121 = scalar_lea.vmem %s1, %s120
      $region16: #{tpu_custom_call.1} parent=11 // pred_fallthru
        _
    $region12: #{tpu_custom_call.1} parent=5 // pred_fallthru
      _
    %p122 = scmp.lt.s32.totalorder %s8, 2
    // Predicated region
    $region17: #{tpu_custom_call.1} parent=5 // pred_check
      %p123 = pneg %p122
    $region18: #{tpu_custom_call.1} parent=5 // pred_check_branch
      %125 = sbr.rel (%p123) target = $region20
    $region19: #{tpu_custom_call.1} parent=5 // pred_region
      // Predicated region
      $region21: #{tpu_custom_call.1} parent=19 // pred_check
        %p126 = pneg %p40
      $region22: #{tpu_custom_call.1} parent=19 // pred_check_branch
        %128 = sbr.rel (%p126) target = $region24
      $region23: #{tpu_custom_call.1} parent=19 // pred_region
        %s129 = smul.u32 128, %s15
        %p130 = scmp.lt.s32.totalorder %s129, 255
        %s131 = scalar_select %p130, %s129, 255
        %s132 = smul.addr %s131, 2
        %s133 = smul.addr %s132, 4
        %s134 = scalar_lea.vmem %s0, %s133
        %s135 = smul.u32 128, %s15
      $region24: #{tpu_custom_call.1} parent=19 // pred_fallthru
        _
    $region20: #{tpu_custom_call.1} parent=5 // pred_fallthru
      _
    %p136 = scmp.le.s32.totalorder 1, %s8
    %p137 = scmp.lt.s32.totalorder %s8, 3
    %p138 = pnand %p136, %p137
    %p139 = pneg %p138
    // Predicated region
    $region25: #{tpu_custom_call.1} parent=5 // pred_check
      _
    $region26: #{tpu_custom_call.1} parent=5 // pred_check_branch
      %141 = sbr.rel (%p138) target = $region28
    $region27: #{tpu_custom_call.1} parent=5 // pred_region
      %s142 = ssub.s32 %s8, 1
      %s143 = smul.u32 128, %s17
      %p144 = scmp.lt.s32.totalorder %s143, 255
      %s145 = scalar_select %p144, %s143, 255
      %s146 = smul.addr %s145, 2
      %s147 = smul.addr %s146, 4
      %s148 = scalar_lea.vmem %s0, %s147
      %p149 = pneg %p46
      %p150 = pneg %p43
      %p151 = scmp.lt.s32.totalorder %s18, 0
      %s152 = scalar_select %p151, %s18, 0
      %s153 = smul.addr %s152, 4
      %s154 = scalar_lea.vmem %s1, %s153
      %p155 = pneg %p72
      %p156 = pneg %p69
      %p157 = pneg %p100
      %p158 = pneg %p97
      %s159 = smul.u32 128, %s17
      %p160 = scmp.lt.s32.totalorder %s159, 255
      %s161 = scalar_select %p160, %s159, 255
      %p162 = scmp.lt.s32.totalorder %s18, 0
      %s163 = scalar_select %p162, %s18, 0
      %s164 = sadd.s32 %s163, %s161
      %s165 = smul.addr %s164, 4
      %s166 = scalar_lea.vmem %s2, %s165
      %s167 = smul.u32 128, %s17
      %p168 = scmp.lt.s32.totalorder %s167, 255
      %s169 = scalar_select %p168, %s167, 255
      %s170 = smul.addr %s169, 2
      %s171 = smul.addr %s170, 4
      %s172 = scalar_lea.vmem %s0, %s171
      %s173 = smul.u32 128, %s17
      %p174 = scmp.lt.s32.totalorder %s18, 0
      %s175 = scalar_select %p174, %s18, 0
      %s176 = smul.addr %s175, 4
      %s177 = scalar_lea.vmem %s1, %s176
      %s178 = smul.u32 128, %s17
      %p179 = scmp.lt.s32.totalorder %s178, 255
      %s180 = scalar_select %p179, %s178, 255
      %p181 = scmp.lt.s32.totalorder %s18, 0
      %s182 = scalar_select %p181, %s18, 0
      %s183 = sadd.s32 %s182, %s180
      %s184 = smul.addr %s183, 4
      %s185 = scalar_lea.vmem %s2, %s184
      %s186 = smul.u32 128, %s17
      %v188 = vld [vmem:[%s172] sm:$0xff]
      %v189 = vld [vmem:[%s172 + $0x8] sm:$0xff]
      %v190 = vld [vmem:[%s172 + $0x10] sm:$0xff]
      %v191 = vld [vmem:[%s172 + $0x18] sm:$0xff]
      %v192 = vld [vmem:[%s172 + $0x20] sm:$0xff]
      %v193 = vld [vmem:[%s172 + $0x28] sm:$0xff]
      %v194 = vld [vmem:[%s172 + $0x30] sm:$0xff]
      %v195 = vld [vmem:[%s172 + $0x38] sm:$0xff]
      %v196 = vld [vmem:[%s172 + $0x40] sm:$0xff]
      %v197 = vld [vmem:[%s172 + $0x48] sm:$0xff]
      %v198 = vld [vmem:[%s172 + $0x50] sm:$0xff]
      %v199 = vld [vmem:[%s172 + $0x58] sm:$0xff]
      %v200 = vld [vmem:[%s172 + $0x60] sm:$0xff]
      %v201 = vld [vmem:[%s172 + $0x68] sm:$0xff]
      %v202 = vld [vmem:[%s172 + $0x70] sm:$0xff]
      %v203 = vld [vmem:[%s172 + $0x78] sm:$0xff]
      %v204 = vld [vmem:[%s172 + $0x80] sm:$0xff]
      %v205 = vld [vmem:[%s172 + $0x88] sm:$0xff]
      %v206 = vld [vmem:[%s172 + $0x90] sm:$0xff]
      %v207 = vld [vmem:[%s172 + $0x98] sm:$0xff]
      %v208 = vld [vmem:[%s172 + $0xa0] sm:$0xff]
      %v209 = vld [vmem:[%s172 + $0xa8] sm:$0xff]
      %v210 = vld [vmem:[%s172 + $0xb0] sm:$0xff]
      %v211 = vld [vmem:[%s172 + $0xb8] sm:$0xff]
      %v212 = vld [vmem:[%s172 + $0xc0] sm:$0xff]
      %v213 = vld [vmem:[%s172 + $0xc8] sm:$0xff]
      %v214 = vld [vmem:[%s172 + $0xd0] sm:$0xff]
      %v215 = vld [vmem:[%s172 + $0xd8] sm:$0xff]
      %v216 = vld [vmem:[%s172 + $0xe0] sm:$0xff]
      %v217 = vld [vmem:[%s172 + $0xe8] sm:$0xff]
      %v218 = vld [vmem:[%s172 + $0xf0] sm:$0xff]
      %v219 = vld [vmem:[%s172 + $0xf8] sm:$0xff]
      %v220 = vld [vmem:[%s172 + $0x100] sm:$0xff]
      %v221 = vld [vmem:[%s172 + $0x108] sm:$0xff]
      %v222 = vld [vmem:[%s172 + $0x110] sm:$0xff]
      %v223 = vld [vmem:[%s172 + $0x118] sm:$0xff]
      %v224 = vld [vmem:[%s172 + $0x120] sm:$0xff]
      %v225 = vld [vmem:[%s172 + $0x128] sm:$0xff]
      %v226 = vld [vmem:[%s172 + $0x130] sm:$0xff]
      %v227 = vld [vmem:[%s172 + $0x138] sm:$0xff]
      %v228 = vld [vmem:[%s172 + $0x140] sm:$0xff]
      %v229 = vld [vmem:[%s172 + $0x148] sm:$0xff]
      %v230 = vld [vmem:[%s172 + $0x150] sm:$0xff]
      %v231 = vld [vmem:[%s172 + $0x158] sm:$0xff]
      %v232 = vld [vmem:[%s172 + $0x160] sm:$0xff]
      %v233 = vld [vmem:[%s172 + $0x168] sm:$0xff]
      %v234 = vld [vmem:[%s172 + $0x170] sm:$0xff]
      %v235 = vld [vmem:[%s172 + $0x178] sm:$0xff]
      %v236 = vld [vmem:[%s172 + $0x180] sm:$0xff]
      %v237 = vld [vmem:[%s172 + $0x188] sm:$0xff]
      %v238 = vld [vmem:[%s172 + $0x190] sm:$0xff]
      %v239 = vld [vmem:[%s172 + $0x198] sm:$0xff]
      %v240 = vld [vmem:[%s172 + $0x1a0] sm:$0xff]
      %v241 = vld [vmem:[%s172 + $0x1a8] sm:$0xff]
      %v242 = vld [vmem:[%s172 + $0x1b0] sm:$0xff]
      %v243 = vld [vmem:[%s172 + $0x1b8] sm:$0xff]
      %v244 = vld [vmem:[%s172 + $0x1c0] sm:$0xff]
      %v245 = vld [vmem:[%s172 + $0x1c8] sm:$0xff]
      %v246 = vld [vmem:[%s172 + $0x1d0] sm:$0xff]
      %v247 = vld [vmem:[%s172 + $0x1d8] sm:$0xff]
      %v248 = vld [vmem:[%s172 + $0x1e0] sm:$0xff]
      %v249 = vld [vmem:[%s172 + $0x1e8] sm:$0xff]
      %v250 = vld [vmem:[%s172 + $0x1f0] sm:$0xff]
      %v251 = vld [vmem:[%s172 + $0x1f8] sm:$0xff]
      %v252 = vld [vmem:[%s172 + $0x200] sm:$0xff]
      %v253 = vld [vmem:[%s172 + $0x208] sm:$0xff]
      %v254 = vld [vmem:[%s172 + $0x210] sm:$0xff]
      %v255 = vld [vmem:[%s172 + $0x218] sm:$0xff]
      %v256 = vld [vmem:[%s172 + $0x220] sm:$0xff]
      %v257 = vld [vmem:[%s172 + $0x228] sm:$0xff]
      %v258 = vld [vmem:[%s172 + $0x230] sm:$0xff]
      %v259 = vld [vmem:[%s172 + $0x238] sm:$0xff]
      %v260 = vld [vmem:[%s172 + $0x240] sm:$0xff]
      %v261 = vld [vmem:[%s172 + $0x248] sm:$0xff]
      %v262 = vld [vmem:[%s172 + $0x250] sm:$0xff]
      %v263 = vld [vmem:[%s172 + $0x258] sm:$0xff]
      %v264 = vld [vmem:[%s172 + $0x260] sm:$0xff]
      %v265 = vld [vmem:[%s172 + $0x268] sm:$0xff]
      %v266 = vld [vmem:[%s172 + $0x270] sm:$0xff]
      %v267 = vld [vmem:[%s172 + $0x278] sm:$0xff]
      %v268 = vld [vmem:[%s172 + $0x280] sm:$0xff]
      %v269 = vld [vmem:[%s172 + $0x288] sm:$0xff]
      %v270 = vld [vmem:[%s172 + $0x290] sm:$0xff]
      %v271 = vld [vmem:[%s172 + $0x298] sm:$0xff]
      %v272 = vld [vmem:[%s172 + $0x2a0] sm:$0xff]
      %v273 = vld [vmem:[%s172 + $0x2a8] sm:$0xff]
      %v274 = vld [vmem:[%s172 + $0x2b0] sm:$0xff]
      %v275 = vld [vmem:[%s172 + $0x2b8] sm:$0xff]
      %v276 = vld [vmem:[%s172 + $0x2c0] sm:$0xff]
      %v277 = vld [vmem:[%s172 + $0x2c8] sm:$0xff]
      %v278 = vld [vmem:[%s172 + $0x2d0] sm:$0xff]
      %v279 = vld [vmem:[%s172 + $0x2d8] sm:$0xff]
      %v280 = vld [vmem:[%s172 + $0x2e0] sm:$0xff]
      %v281 = vld [vmem:[%s172 + $0x2e8] sm:$0xff]
      %v282 = vld [vmem:[%s172 + $0x2f0] sm:$0xff]
      %v283 = vld [vmem:[%s172 + $0x2f8] sm:$0xff]
      %v284 = vld [vmem:[%s172 + $0x300] sm:$0xff]
      %v285 = vld [vmem:[%s172 + $0x308] sm:$0xff]
      %v286 = vld [vmem:[%s172 + $0x310] sm:$0xff]
      %v287 = vld [vmem:[%s172 + $0x318] sm:$0xff]
      %v288 = vld [vmem:[%s172 + $0x320] sm:$0xff]
      %v289 = vld [vmem:[%s172 + $0x328] sm:$0xff]
      %v290 = vld [vmem:[%s172 + $0x330] sm:$0xff]
      %v291 = vld [vmem:[%s172 + $0x338] sm:$0xff]
      %v292 = vld [vmem:[%s172 + $0x340] sm:$0xff]
      %v293 = vld [vmem:[%s172 + $0x348] sm:$0xff]
      %v294 = vld [vmem:[%s172 + $0x350] sm:$0xff]
      %v295 = vld [vmem:[%s172 + $0x358] sm:$0xff]
      %v296 = vld [vmem:[%s172 + $0x360] sm:$0xff]
      %v297 = vld [vmem:[%s172 + $0x368] sm:$0xff]
      %v298 = vld [vmem:[%s172 + $0x370] sm:$0xff]
      %v299 = vld [vmem:[%s172 + $0x378] sm:$0xff]
      %v300 = vld [vmem:[%s172 + $0x380] sm:$0xff]
      %v301 = vld [vmem:[%s172 + $0x388] sm:$0xff]
      %v302 = vld [vmem:[%s172 + $0x390] sm:$0xff]
      %v303 = vld [vmem:[%s172 + $0x398] sm:$0xff]
      %v304 = vld [vmem:[%s172 + $0x3a0] sm:$0xff]
      %v305 = vld [vmem:[%s172 + $0x3a8] sm:$0xff]
      %v306 = vld [vmem:[%s172 + $0x3b0] sm:$0xff]
      %v307 = vld [vmem:[%s172 + $0x3b8] sm:$0xff]
      %v308 = vld [vmem:[%s172 + $0x3c0] sm:$0xff]
      %v309 = vld [vmem:[%s172 + $0x3c8] sm:$0xff]
      %v310 = vld [vmem:[%s172 + $0x3d0] sm:$0xff]
      %v311 = vld [vmem:[%s172 + $0x3d8] sm:$0xff]
      %v312 = vld [vmem:[%s172 + $0x3e0] sm:$0xff]
      %v313 = vld [vmem:[%s172 + $0x3e8] sm:$0xff]
      %v314 = vld [vmem:[%s172 + $0x3f0] sm:$0xff]
      %v315 = vld [vmem:[%s172 + $0x3f8] sm:$0xff]
      %v316 = vld [vmem:[%s177] sm:$0xf]
      %v317 = vld [vmem:[%s177 + $0x4] sm:$0xf]
      %v318 = vld [vmem:[%s177 + $0x8] sm:$0xf]
      %v319 = vld [vmem:[%s177 + $0xc] sm:$0xf]
      %v320 = vld [vmem:[%s177 + $0x10] sm:$0xf]
      %v321 = vld [vmem:[%s177 + $0x14] sm:$0xf]
      %v322 = vld [vmem:[%s177 + $0x18] sm:$0xf]
      %v323 = vld [vmem:[%s177 + $0x1c] sm:$0xf]
      %v324 = vld [vmem:[%s177 + $0x20] sm:$0xf]
      %v325 = vld [vmem:[%s177 + $0x24] sm:$0xf]
      %v326 = vld [vmem:[%s177 + $0x28] sm:$0xf]
      %v327 = vld [vmem:[%s177 + $0x2c] sm:$0xf]
      %v328 = vld [vmem:[%s177 + $0x30] sm:$0xf]
      %v329 = vld [vmem:[%s177 + $0x34] sm:$0xf]
      %v330 = vld [vmem:[%s177 + $0x38] sm:$0xf]
      %v331 = vld [vmem:[%s177 + $0x3c] sm:$0xf]
      %v332 = vld [vmem:[%s177 + $0x40] sm:$0xf]
      %v333 = vld [vmem:[%s177 + $0x44] sm:$0xf]
      %v334 = vld [vmem:[%s177 + $0x48] sm:$0x3]
      %v463 = vunpack.c.l.b16 %v188
      %v464 = vunpack.c.h.b16 %v188
      %v465 = vunpack.c.l.b16 %v189
      %v466 = vunpack.c.h.b16 %v189
      %v467 = vunpack.c.l.b16 %v190
      %v468 = vunpack.c.h.b16 %v190
      %v469 = vunpack.c.l.b16 %v191
      %v470 = vunpack.c.h.b16 %v191
      %v471 = vunpack.c.l.b16 %v192
      %v472 = vunpack.c.h.b16 %v192
      %v473 = vunpack.c.l.b16 %v193
      %v474 = vunpack.c.h.b16 %v193
      %v475 = vunpack.c.l.b16 %v194
      %v476 = vunpack.c.h.b16 %v194
      %v477 = vunpack.c.l.b16 %v195
      %v478 = vunpack.c.h.b16 %v195
      %v479 = vunpack.c.l.b16 %v196
      %v480 = vunpack.c.h.b16 %v196
      %v481 = vunpack.c.l.b16 %v197
      %v482 = vunpack.c.h.b16 %v197
      %v483 = vunpack.c.l.b16 %v198
      %v484 = vunpack.c.h.b16 %v198
      %v485 = vunpack.c.l.b16 %v199
      %v486 = vunpack.c.h.b16 %v199
      %v487 = vunpack.c.l.b16 %v200
      %v488 = vunpack.c.h.b16 %v200
      %v489 = vunpack.c.l.b16 %v201
      %v490 = vunpack.c.h.b16 %v201
      %v491 = vunpack.c.l.b16 %v202
      %v492 = vunpack.c.h.b16 %v202
      %v493 = vunpack.c.l.b16 %v203
      %v494 = vunpack.c.h.b16 %v203
      %v495 = vunpack.c.l.b16 %v204
      %v496 = vunpack.c.h.b16 %v204
      %v497 = vunpack.c.l.b16 %v205
      %v498 = vunpack.c.h.b16 %v205
      %v499 = vunpack.c.l.b16 %v206
      %v500 = vunpack.c.h.b16 %v206
      %v501 = vunpack.c.l.b16 %v207
      %v502 = vunpack.c.h.b16 %v207
      %v503 = vunpack.c.l.b16 %v208
      %v504 = vunpack.c.h.b16 %v208
      %v505 = vunpack.c.l.b16 %v209
      %v506 = vunpack.c.h.b16 %v209
      %v507 = vunpack.c.l.b16 %v210
      %v508 = vunpack.c.h.b16 %v210
      %v509 = vunpack.c.l.b16 %v211
      %v510 = vunpack.c.h.b16 %v211
      %v511 = vunpack.c.l.b16 %v212
      %v512 = vunpack.c.h.b16 %v212
      %v513 = vunpack.c.l.b16 %v213
      %v514 = vunpack.c.h.b16 %v213
      %v515 = vunpack.c.l.b16 %v214
      %v516 = vunpack.c.h.b16 %v214
      %v517 = vunpack.c.l.b16 %v215
      %v518 = vunpack.c.h.b16 %v215
      %v519 = vunpack.c.l.b16 %v216
      %v520 = vunpack.c.h.b16 %v216
      %v521 = vunpack.c.l.b16 %v217
      %v522 = vunpack.c.h.b16 %v217
      %v523 = vunpack.c.l.b16 %v218
      %v524 = vunpack.c.h.b16 %v218
      %v525 = vunpack.c.l.b16 %v219
      %v526 = vunpack.c.h.b16 %v219
      %v527 = vunpack.c.l.b16 %v220
      %v528 = vunpack.c.h.b16 %v220
      %v529 = vunpack.c.l.b16 %v221
      %v530 = vunpack.c.h.b16 %v221
      %v531 = vunpack.c.l.b16 %v222
      %v532 = vunpack.c.h.b16 %v222
      %v533 = vunpack.c.l.b16 %v223
      %v534 = vunpack.c.h.b16 %v223
      %v535 = vunpack.c.l.b16 %v224
      %v536 = vunpack.c.h.b16 %v224
      %v537 = vunpack.c.l.b16 %v225
      %v538 = vunpack.c.h.b16 %v225
      %v539 = vunpack.c.l.b16 %v226
      %v540 = vunpack.c.h.b16 %v226
      %v541 = vunpack.c.l.b16 %v227
      %v542 = vunpack.c.h.b16 %v227
      %v543 = vunpack.c.l.b16 %v228
      %v544 = vunpack.c.h.b16 %v228
      %v545 = vunpack.c.l.b16 %v229
      %v546 = vunpack.c.h.b16 %v229
      %v547 = vunpack.c.l.b16 %v230
      %v548 = vunpack.c.h.b16 %v230
      %v549 = vunpack.c.l.b16 %v231
      %v550 = vunpack.c.h.b16 %v231
      %v551 = vunpack.c.l.b16 %v232
      %v552 = vunpack.c.h.b16 %v232
      %v553 = vunpack.c.l.b16 %v233
      %v554 = vunpack.c.h.b16 %v233
      %v555 = vunpack.c.l.b16 %v234
      %v556 = vunpack.c.h.b16 %v234
      %v557 = vunpack.c.l.b16 %v235
      %v558 = vunpack.c.h.b16 %v235
      %v559 = vunpack.c.l.b16 %v236
      %v560 = vunpack.c.h.b16 %v236
      %v561 = vunpack.c.l.b16 %v237
      %v562 = vunpack.c.h.b16 %v237
      %v563 = vunpack.c.l.b16 %v238
      %v564 = vunpack.c.h.b16 %v238
      %v565 = vunpack.c.l.b16 %v239
      %v566 = vunpack.c.h.b16 %v239
      %v567 = vunpack.c.l.b16 %v240
      %v568 = vunpack.c.h.b16 %v240
      %v569 = vunpack.c.l.b16 %v241
      %v570 = vunpack.c.h.b16 %v241
      %v571 = vunpack.c.l.b16 %v242
      %v572 = vunpack.c.h.b16 %v242
      %v573 = vunpack.c.l.b16 %v243
      %v574 = vunpack.c.h.b16 %v243
      %v575 = vunpack.c.l.b16 %v244
      %v576 = vunpack.c.h.b16 %v244
      %v577 = vunpack.c.l.b16 %v245
      %v578 = vunpack.c.h.b16 %v245
      %v579 = vunpack.c.l.b16 %v246
      %v580 = vunpack.c.h.b16 %v246
      %v581 = vunpack.c.l.b16 %v247
      %v582 = vunpack.c.h.b16 %v247
      %v583 = vunpack.c.l.b16 %v248
      %v584 = vunpack.c.h.b16 %v248
      %v585 = vunpack.c.l.b16 %v249
      %v586 = vunpack.c.h.b16 %v249
      %v587 = vunpack.c.l.b16 %v250
      %v588 = vunpack.c.h.b16 %v250
      %v589 = vunpack.c.l.b16 %v251
      %v590 = vunpack.c.h.b16 %v251
      %v591 = vunpack.c.l.b16 %v252
      %v592 = vunpack.c.h.b16 %v252
      %v593 = vunpack.c.l.b16 %v253
      %v594 = vunpack.c.h.b16 %v253
      %v595 = vunpack.c.l.b16 %v254
      %v596 = vunpack.c.h.b16 %v254
      %v597 = vunpack.c.l.b16 %v255
      %v598 = vunpack.c.h.b16 %v255
      %v599 = vunpack.c.l.b16 %v256
      %v600 = vunpack.c.h.b16 %v256
      %v601 = vunpack.c.l.b16 %v257
      %v602 = vunpack.c.h.b16 %v257
      %v603 = vunpack.c.l.b16 %v258
      %v604 = vunpack.c.h.b16 %v258
      %v605 = vunpack.c.l.b16 %v259
      %v606 = vunpack.c.h.b16 %v259
      %v607 = vunpack.c.l.b16 %v260
      %v608 = vunpack.c.h.b16 %v260
      %v609 = vunpack.c.l.b16 %v261
      %v610 = vunpack.c.h.b16 %v261
      %v611 = vunpack.c.l.b16 %v262
      %v612 = vunpack.c.h.b16 %v262
      %v613 = vunpack.c.l.b16 %v263
      %v614 = vunpack.c.h.b16 %v263
      %v615 = vunpack.c.l.b16 %v264
      %v616 = vunpack.c.h.b16 %v264
      %v617 = vunpack.c.l.b16 %v265
      %v618 = vunpack.c.h.b16 %v265
      %v619 = vunpack.c.l.b16 %v266
      %v620 = vunpack.c.h.b16 %v266
      %v621 = vunpack.c.l.b16 %v267
      %v622 = vunpack.c.h.b16 %v267
      %v623 = vunpack.c.l.b16 %v268
      %v624 = vunpack.c.h.b16 %v268
      %v625 = vunpack.c.l.b16 %v269
      %v626 = vunpack.c.h.b16 %v269
      %v627 = vunpack.c.l.b16 %v270
      %v628 = vunpack.c.h.b16 %v270
      %v629 = vunpack.c.l.b16 %v271
      %v630 = vunpack.c.h.b16 %v271
      %v631 = vunpack.c.l.b16 %v272
      %v632 = vunpack.c.h.b16 %v272
      %v633 = vunpack.c.l.b16 %v273
      %v634 = vunpack.c.h.b16 %v273
      %v635 = vunpack.c.l.b16 %v274
      %v636 = vunpack.c.h.b16 %v274
      %v637 = vunpack.c.l.b16 %v275
      %v638 = vunpack.c.h.b16 %v275
      %v639 = vunpack.c.l.b16 %v276
      %v640 = vunpack.c.h.b16 %v276
      %v641 = vunpack.c.l.b16 %v277
      %v642 = vunpack.c.h.b16 %v277
      %v643 = vunpack.c.l.b16 %v278
      %v644 = vunpack.c.h.b16 %v278
      %v645 = vunpack.c.l.b16 %v279
      %v646 = vunpack.c.h.b16 %v279
      %v647 = vunpack.c.l.b16 %v280
      %v648 = vunpack.c.h.b16 %v280
      %v649 = vunpack.c.l.b16 %v281
      %v650 = vunpack.c.h.b16 %v281
      %v651 = vunpack.c.l.b16 %v282
      %v652 = vunpack.c.h.b16 %v282
      %v653 = vunpack.c.l.b16 %v283
      %v654 = vunpack.c.h.b16 %v283
      %v655 = vunpack.c.l.b16 %v284
      %v656 = vunpack.c.h.b16 %v284
      %v657 = vunpack.c.l.b16 %v285
      %v658 = vunpack.c.h.b16 %v285
      %v659 = vunpack.c.l.b16 %v286
      %v660 = vunpack.c.h.b16 %v286
      %v661 = vunpack.c.l.b16 %v287
      %v662 = vunpack.c.h.b16 %v287
      %v663 = vunpack.c.l.b16 %v288
      %v664 = vunpack.c.h.b16 %v288
      %v665 = vunpack.c.l.b16 %v289
      %v666 = vunpack.c.h.b16 %v289
      %v667 = vunpack.c.l.b16 %v290
      %v668 = vunpack.c.h.b16 %v290
      %v669 = vunpack.c.l.b16 %v291
      %v670 = vunpack.c.h.b16 %v291
      %v671 = vunpack.c.l.b16 %v292
      %v672 = vunpack.c.h.b16 %v292
      %v673 = vunpack.c.l.b16 %v293
      %v674 = vunpack.c.h.b16 %v293
      %v675 = vunpack.c.l.b16 %v294
      %v676 = vunpack.c.h.b16 %v294
      %v677 = vunpack.c.l.b16 %v295
      %v678 = vunpack.c.h.b16 %v295
      %v679 = vunpack.c.l.b16 %v296
      %v680 = vunpack.c.h.b16 %v296
      %v681 = vunpack.c.l.b16 %v297
      %v682 = vunpack.c.h.b16 %v297
      %v683 = vunpack.c.l.b16 %v298
      %v684 = vunpack.c.h.b16 %v298
      %v685 = vunpack.c.l.b16 %v299
      %v686 = vunpack.c.h.b16 %v299
      %v687 = vunpack.c.l.b16 %v300
      %v688 = vunpack.c.h.b16 %v300
      %v689 = vunpack.c.l.b16 %v301
      %v690 = vunpack.c.h.b16 %v301
      %v691 = vunpack.c.l.b16 %v302
      %v692 = vunpack.c.h.b16 %v302
      %v693 = vunpack.c.l.b16 %v303
      %v694 = vunpack.c.h.b16 %v303
      %v695 = vunpack.c.l.b16 %v304
      %v696 = vunpack.c.h.b16 %v304
      %v697 = vunpack.c.l.b16 %v305
      %v698 = vunpack.c.h.b16 %v305
      %v699 = vunpack.c.l.b16 %v306
      %v700 = vunpack.c.h.b16 %v306
      %v701 = vunpack.c.l.b16 %v307
      %v702 = vunpack.c.h.b16 %v307
      %v703 = vunpack.c.l.b16 %v308
      %v704 = vunpack.c.h.b16 %v308
      %v705 = vunpack.c.l.b16 %v309
      %v706 = vunpack.c.h.b16 %v309
      %v707 = vunpack.c.l.b16 %v310
      %v708 = vunpack.c.h.b16 %v310
      %v709 = vunpack.c.l.b16 %v311
      %v710 = vunpack.c.h.b16 %v311
      %v711 = vunpack.c.l.b16 %v312
      %v712 = vunpack.c.h.b16 %v312
      %v713 = vunpack.c.l.b16 %v313
      %v714 = vunpack.c.h.b16 %v313
      %v715 = vunpack.c.l.b16 %v314
      %v716 = vunpack.c.h.b16 %v314
      %v717 = vunpack.c.l.b16 %v315
      %v718 = vunpack.c.h.b16 %v315
      %v719 = vpack.c.b16 %v465, %v463
      %v720 = vpack.c.b16 %v466, %v464
      %v721 = vpack.c.b16 %v469, %v467
      %v722 = vpack.c.b16 %v470, %v468
      %v723 = vpack.c.b16 %v473, %v471
      %v724 = vpack.c.b16 %v474, %v472
      %v725 = vpack.c.b16 %v477, %v475
      %v726 = vpack.c.b16 %v478, %v476
      %v727 = vpack.c.b16 %v481, %v479
      %v728 = vpack.c.b16 %v482, %v480
      %v729 = vpack.c.b16 %v485, %v483
      %v730 = vpack.c.b16 %v486, %v484
      %v731 = vpack.c.b16 %v489, %v487
      %v732 = vpack.c.b16 %v490, %v488
      %v733 = vpack.c.b16 %v493, %v491
      %v734 = vpack.c.b16 %v494, %v492
      %v735 = vpack.c.b16 %v497, %v495
      %v736 = vpack.c.b16 %v498, %v496
      %v737 = vpack.c.b16 %v501, %v499
      %v738 = vpack.c.b16 %v502, %v500
      %v739 = vpack.c.b16 %v505, %v503
      %v740 = vpack.c.b16 %v506, %v504
      %v741 = vpack.c.b16 %v509, %v507
      %v742 = vpack.c.b16 %v510, %v508
      %v743 = vpack.c.b16 %v513, %v511
      %v744 = vpack.c.b16 %v514, %v512
      %v745 = vpack.c.b16 %v517, %v515
      %v746 = vpack.c.b16 %v518, %v516
      %v747 = vpack.c.b16 %v521, %v519
      %v748 = vpack.c.b16 %v522, %v520
      %v749 = vpack.c.b16 %v525, %v523
      %v750 = vpack.c.b16 %v526, %v524
      %v751 = vpack.c.b16 %v529, %v527
      %v752 = vpack.c.b16 %v530, %v528
      %v753 = vpack.c.b16 %v533, %v531
      %v754 = vpack.c.b16 %v534, %v532
      %v755 = vpack.c.b16 %v537, %v535
      %v756 = vpack.c.b16 %v538, %v536
      %v757 = vpack.c.b16 %v541, %v539
      %v758 = vpack.c.b16 %v542, %v540
      %v759 = vpack.c.b16 %v545, %v543
      %v760 = vpack.c.b16 %v546, %v544
      %v761 = vpack.c.b16 %v549, %v547
      %v762 = vpack.c.b16 %v550, %v548
      %v763 = vpack.c.b16 %v553, %v551
      %v764 = vpack.c.b16 %v554, %v552
      %v765 = vpack.c.b16 %v557, %v555
      %v766 = vpack.c.b16 %v558, %v556
      %v767 = vpack.c.b16 %v561, %v559
      %v768 = vpack.c.b16 %v562, %v560
      %v769 = vpack.c.b16 %v565, %v563
      %v770 = vpack.c.b16 %v566, %v564
      %v771 = vpack.c.b16 %v569, %v567
      %v772 = vpack.c.b16 %v570, %v568
      %v773 = vpack.c.b16 %v573, %v571
      %v774 = vpack.c.b16 %v574, %v572
      %v775 = vpack.c.b16 %v577, %v575
      %v776 = vpack.c.b16 %v578, %v576
      %v777 = vpack.c.b16 %v581, %v579
      %v778 = vpack.c.b16 %v582, %v580
      %v779 = vpack.c.b16 %v585, %v583
      %v780 = vpack.c.b16 %v586, %v584
      %v781 = vpack.c.b16 %v589, %v587
      %v782 = vpack.c.b16 %v590, %v588
      %v783 = vpack.c.b16 %v593, %v591
      %v784 = vpack.c.b16 %v594, %v592
      %v785 = vpack.c.b16 %v597, %v595
      %v786 = vpack.c.b16 %v598, %v596
      %v787 = vpack.c.b16 %v601, %v599
      %v788 = vpack.c.b16 %v602, %v600
      %v789 = vpack.c.b16 %v605, %v603
      %v790 = vpack.c.b16 %v606, %v604
      %v791 = vpack.c.b16 %v609, %v607
      %v792 = vpack.c.b16 %v610, %v608
      %v793 = vpack.c.b16 %v613, %v611
      %v794 = vpack.c.b16 %v614, %v612
      %v795 = vpack.c.b16 %v617, %v615
      %v796 = vpack.c.b16 %v618, %v616
      %v797 = vpack.c.b16 %v621, %v619
      %v798 = vpack.c.b16 %v622, %v620
      %v799 = vpack.c.b16 %v625, %v623
      %v800 = vpack.c.b16 %v626, %v624
      %v801 = vpack.c.b16 %v629, %v627
      %v802 = vpack.c.b16 %v630, %v628
      %v803 = vpack.c.b16 %v633, %v631
      %v804 = vpack.c.b16 %v634, %v632
      %v805 = vpack.c.b16 %v637, %v635
      %v806 = vpack.c.b16 %v638, %v636
      %v807 = vpack.c.b16 %v641, %v639
      %v808 = vpack.c.b16 %v642, %v640
      %v809 = vpack.c.b16 %v645, %v643
      %v810 = vpack.c.b16 %v646, %v644
      %v811 = vpack.c.b16 %v649, %v647
      %v812 = vpack.c.b16 %v650, %v648
      %v813 = vpack.c.b16 %v653, %v651
      %v814 = vpack.c.b16 %v654, %v652
      %v815 = vpack.c.b16 %v657, %v655
      %v816 = vpack.c.b16 %v658, %v656
      %v817 = vpack.c.b16 %v661, %v659
      %v818 = vpack.c.b16 %v662, %v660
      %v819 = vpack.c.b16 %v665, %v663
      %v820 = vpack.c.b16 %v666, %v664
      %v821 = vpack.c.b16 %v669, %v667
      %v822 = vpack.c.b16 %v670, %v668
      %v823 = vpack.c.b16 %v673, %v671
      %v824 = vpack.c.b16 %v674, %v672
      %v825 = vpack.c.b16 %v677, %v675
      %v826 = vpack.c.b16 %v678, %v676
      %v827 = vpack.c.b16 %v681, %v679
      %v828 = vpack.c.b16 %v682, %v680
      %v829 = vpack.c.b16 %v685, %v683
      %v830 = vpack.c.b16 %v686, %v684
      %v831 = vpack.c.b16 %v689, %v687
      %v832 = vpack.c.b16 %v690, %v688
      %v833 = vpack.c.b16 %v693, %v691
      %v834 = vpack.c.b16 %v694, %v692
      %v835 = vpack.c.b16 %v697, %v695
      %v836 = vpack.c.b16 %v698, %v696
      %v837 = vpack.c.b16 %v701, %v699
      %v838 = vpack.c.b16 %v702, %v700
      %v839 = vpack.c.b16 %v705, %v703
      %v840 = vpack.c.b16 %v706, %v704
      %v841 = vpack.c.b16 %v709, %v707
      %v842 = vpack.c.b16 %v710, %v708
      %v843 = vpack.c.b16 %v713, %v711
      %v844 = vpack.c.b16 %v714, %v712
      %v845 = vpack.c.b16 %v717, %v715
      %v846 = vpack.c.b16 %v718, %v716
      %v930 = vunpack.c.l.b16 %v316
      %v931 = vunpack.c.l.b16 %v317
      %v932 = vunpack.c.l.b16 %v318
      %v933 = vunpack.c.l.b16 %v319
      %v934 = vunpack.c.l.b16 %v320
      %v935 = vunpack.c.l.b16 %v321
      %v936 = vunpack.c.l.b16 %v322
      %v937 = vunpack.c.l.b16 %v323
      %v938 = vunpack.c.l.b16 %v324
      %v939 = vunpack.c.l.b16 %v325
      %v940 = vunpack.c.l.b16 %v326
      %v941 = vunpack.c.l.b16 %v327
      %v942 = vunpack.c.l.b16 %v328
      %v943 = vunpack.c.l.b16 %v329
      %v944 = vunpack.c.l.b16 %v330
      %v945 = vunpack.c.l.b16 %v331
      %v946 = vunpack.c.l.b16 %v332
      %v947 = vunpack.c.l.b16 %v333
      %v948 = vunpack.c.l.b16 %v334
      %v949 = vpack.c.b16 %v931, %v930
      %v950 = vpack.c.b16 %v933, %v932
      %v951 = vpack.c.b16 %v935, %v934
      %v952 = vpack.c.b16 %v937, %v936
      %v953 = vpack.c.b16 %v939, %v938
      %v954 = vpack.c.b16 %v941, %v940
      %v955 = vpack.c.b16 %v943, %v942
      %v956 = vpack.c.b16 %v945, %v944
      %v957 = vpack.c.b16 %v947, %v946
      %v958 = vpack.c.b16 %v948, %v948
      %vm968 = vcmask 154624
      %v970 = vsel %vm968, %v720, 0
      %v973 = vsel %vm968, %v722, 0
      %v976 = vsel %vm968, %v724, 0
      %v979 = vsel %vm968, %v726, 0
      %v982 = vsel %vm968, %v728, 0
      %v985 = vsel %vm968, %v730, 0
      %v988 = vsel %vm968, %v732, 0
      %v991 = vsel %vm968, %v734, 0
      %v994 = vsel %vm968, %v736, 0
      %v997 = vsel %vm968, %v738, 0
      %v1000 = vsel %vm968, %v740, 0
      %v1003 = vsel %vm968, %v742, 0
      %v1006 = vsel %vm968, %v744, 0
      %v1009 = vsel %vm968, %v746, 0
      %v1012 = vsel %vm968, %v748, 0
      %v1015 = vsel %vm968, %v750, 0
      %v1018 = vsel %vm968, %v752, 0
      %v1021 = vsel %vm968, %v754, 0
      %v1024 = vsel %vm968, %v756, 0
      %v1027 = vsel %vm968, %v758, 0
      %v1030 = vsel %vm968, %v760, 0
      %v1033 = vsel %vm968, %v762, 0
      %v1036 = vsel %vm968, %v764, 0
      %v1039 = vsel %vm968, %v766, 0
      %v1042 = vsel %vm968, %v768, 0
      %v1045 = vsel %vm968, %v770, 0
      %v1048 = vsel %vm968, %v772, 0
      %v1051 = vsel %vm968, %v774, 0
      %v1054 = vsel %vm968, %v776, 0
      %v1057 = vsel %vm968, %v778, 0
      %v1060 = vsel %vm968, %v780, 0
      %v1063 = vsel %vm968, %v782, 0
      %v1066 = vsel %vm968, %v784, 0
      %v1069 = vsel %vm968, %v786, 0
      %v1072 = vsel %vm968, %v788, 0
      %v1075 = vsel %vm968, %v790, 0
      %v1078 = vsel %vm968, %v792, 0
      %v1081 = vsel %vm968, %v794, 0
      %v1084 = vsel %vm968, %v796, 0
      %v1087 = vsel %vm968, %v798, 0
      %v1090 = vsel %vm968, %v800, 0
      %v1093 = vsel %vm968, %v802, 0
      %v1096 = vsel %vm968, %v804, 0
      %v1099 = vsel %vm968, %v806, 0
      %v1102 = vsel %vm968, %v808, 0
      %v1105 = vsel %vm968, %v810, 0
      %v1108 = vsel %vm968, %v812, 0
      %v1111 = vsel %vm968, %v814, 0
      %v1114 = vsel %vm968, %v816, 0
      %v1117 = vsel %vm968, %v818, 0
      %v1120 = vsel %vm968, %v820, 0
      %v1123 = vsel %vm968, %v822, 0
      %v1126 = vsel %vm968, %v824, 0
      %v1129 = vsel %vm968, %v826, 0
      %v1132 = vsel %vm968, %v828, 0
      %v1135 = vsel %vm968, %v830, 0
      %v1138 = vsel %vm968, %v832, 0
      %v1141 = vsel %vm968, %v834, 0
      %v1144 = vsel %vm968, %v836, 0
      %v1147 = vsel %vm968, %v838, 0
      %v1150 = vsel %vm968, %v840, 0
      %v1153 = vsel %vm968, %v842, 0
      %v1156 = vsel %vm968, %v844, 0
      %v1159 = vsel %vm968, %v846, 0
      %vm1161 = vcmask 1040384
      %vm1162 = vcmask 1041408
      %v1163 = vsel %vm1161, 4294967295, 65535
      %v1164 = vsel %vm1162, %v1163, 0
      %v1166 = vand.u32 %v958, %v1164
      %1168 = vmatprep.subr.bf16.mxu0 0
      %1169 = vmatpush1.bf16.msra.mxu0 %v949
      %1170 = vmatprep.subr.bf16.mxu0 0
      %1171 = vmatpush1.bf16.msra.mxu0 %v950
      %1172 = vmatprep.subr.bf16.mxu0 0
      %1173 = vmatpush1.bf16.msra.mxu0 %v951
      %1174 = vmatprep.subr.bf16.mxu0 0
      %1175 = vmatpush1.bf16.msra.mxu0 %v952
      %1176 = vmatprep.subr.bf16.mxu0 0
      %1177 = vmatpush1.bf16.msra.mxu0 %v953
      %1178 = vmatprep.subr.bf16.mxu0 0
      %1179 = vmatpush1.bf16.msra.mxu0 %v954
      %1180 = vmatprep.subr.bf16.mxu0 0
      %1181 = vmatpush1.bf16.msra.mxu0 %v955
      %1182 = vmatprep.subr.bf16.mxu0 0
      %1183 = vmatpush1.bf16.msra.mxu0 %v956
      %1184 = vmatprep.subr.bf16.mxu0 0
      %1185 = vmatpush1.bf16.msra.mxu0 %v957
      %1186 = vmatprep.subr.bf16.mxu0 0
      %1187 = vmatpush1.bf16.msra.mxu0 %v1166
      %1188 = vmatprep.subr.bf16.mxu0 0
      %1189 = vmatpush1.bf16.msra.mxu0 0
      %1190 = vmatprep.subr.bf16.mxu0 0
      %1191 = vmatpush1.bf16.msra.mxu0 0
      %1192 = vmatprep.subr.bf16.mxu0 0
      %1193 = vmatpush1.bf16.msra.mxu0 0
      %1194 = vmatprep.subr.bf16.mxu0 0
      %1195 = vmatpush1.bf16.msra.mxu0 0
      %1196 = vmatprep.subr.bf16.mxu0 0
      %1197 = vmatpush1.bf16.msra.mxu0 0
      %1198 = vmatprep.subr.bf16.mxu0 0
      %1199 = vmatpush1.bf16.msra.mxu0 0
      %1200 = vmatprep.mubr.bf16.mxu0 %v970
      %1201 = vmatmul.mubr.bf16.gmra.mrb[0].mxu0 %v719
      %v1202 = vpop.f32.mrb[0].mxu0
      %v1203 = vadd.f32 0.0, %v1202
      %v1204 = vpop.f32.mrb[0].mxu0
      %v1205 = vpop.f32.mrb[0].mxu0
      %v1206 = vadd.f32 0.0, %v1205
      %v1207 = vpop.f32.mrb[0].mxu0
      %1208 = vmatprep.mubr.bf16.mxu0 %v973
      %1209 = vmatmul.mubr.bf16.gmra.mrb[0].mxu0 %v721
      %v1210 = vpop.f32.mrb[0].mxu0
      %v1211 = vadd.f32 0.0, %v1210
      %v1212 = vpop.f32.mrb[0].mxu0
      %v1213 = vpop.f32.mrb[0].mxu0
      %v1214 = vadd.f32 0.0, %v1213
      %v1215 = vpop.f32.mrb[0].mxu0
      %1216 = vmatprep.mubr.bf16.mxu0 %v976
      %1217 = vmatmul.mubr.bf16.gmra.mrb[0].mxu0 %v723
      %v1218 = vpop.f32.mrb[0].mxu0
      %v1219 = vadd.f32 0.0, %v1218
      %v1220 = vpop.f32.mrb[0].mxu0
      %v1221 = vpop.f32.mrb[0].mxu0
      %v1222 = vadd.f32 0.0, %v1221
      %v1223 = vpop.f32.mrb[0].mxu0
      %1224 = vmatprep.mubr.bf16.mxu0 %v979
      %1225 = vmatmul.mubr.bf16.gmra.mrb[0].mxu0 %v725
      %v1226 = vpop.f32.mrb[0].mxu0
      %v1227 = vadd.f32 0.0, %v1226
      %v1228 = vpop.f32.mrb[0].mxu0
      %v1229 = vpop.f32.mrb[0].mxu0
      %v1230 = vadd.f32 0.0, %v1229
      %v1231 = vpop.f32.mrb[0].mxu0
      %1232 = vmatprep.mubr.bf16.mxu0 %v982
      %1233 = vmatmul.mubr.bf16.gmra.mrb[0].mxu0 %v727
      %v1234 = vpop.f32.mrb[0].mxu0
      %v1235 = vadd.f32 0.0, %v1234
      %v1236 = vpop.f32.mrb[0].mxu0
      %v1237 = vpop.f32.mrb[0].mxu0
      %v1238 = vadd.f32 0.0, %v1237
      %v1239 = vpop.f32.mrb[0].mxu0
      %1240 = vmatprep.mubr.bf16.mxu0 %v985
      %1241 = vmatmul.mubr.bf16.gmra.mrb[0].mxu0 %v729
      %v1242 = vpop.f32.mrb[0].mxu0
      %v1243 = vadd.f32 0.0, %v1242
      %v1244 = vpop.f32.mrb[0].mxu0
      %v1245 = vpop.f32.mrb[0].mxu0
      %v1246 = vadd.f32 0.0, %v1245
      %v1247 = vpop.f32.mrb[0].mxu0
      %1248 = vmatprep.mubr.bf16.mxu0 %v988
      %1249 = vmatmul.mubr.bf16.gmra.mrb[0].mxu0 %v731
      %v1250 = vpop.f32.mrb[0].mxu0
      %v1251 = vadd.f32 0.0, %v1250
      %v1252 = vpop.f32.mrb[0].mxu0
      %v1253 = vpop.f32.mrb[0].mxu0
      %v1254 = vadd.f32 0.0, %v1253
      %v1255 = vpop.f32.mrb[0].mxu0
      %1256 = vmatprep.mubr.bf16.mxu0 %v991
      %1257 = vmatmul.mubr.bf16.gmra.mrb[0].mxu0 %v733
      %v1258 = vpop.f32.mrb[0].mxu0
      %v1259 = vadd.f32 0.0, %v1258
      %v1260 = vpop.f32.mrb[0].mxu0
      %v1261 = vpop.f32.mrb[0].mxu0
      %v1262 = vadd.f32 0.0, %v1261
      %v1263 = vpop.f32.mrb[0].mxu0
      %1264 = vmatprep.mubr.bf16.mxu0 %v994
      %1265 = vmatmul.mubr.bf16.gmra.mrb[0].mxu0 %v735
      %v1266 = vpop.f32.mrb[0].mxu0
      %v1267 = vadd.f32 0.0, %v1266
      %v1268 = vpop.f32.mrb[0].mxu0
      %v1269 = vpop.f32.mrb[0].mxu0
      %v1270 = vadd.f32 0.0, %v1269
      %v1271 = vpop.f32.mrb[0].mxu0
      %1272 = vmatprep.mubr.bf16.mxu0 %v997
      %1273 = vmatmul.mubr.bf16.gmra.mrb[0].mxu0 %v737
      %v1274 = vpop.f32.mrb[0].mxu0
      %v1275 = vadd.f32 0.0, %v1274
      %v1276 = vpop.f32.mrb[0].mxu0
      %v1277 = vpop.f32.mrb[0].mxu0
      %v1278 = vadd.f32 0.0, %v1277
      %v1279 = vpop.f32.mrb[0].mxu0
      %1280 = vmatprep.mubr.bf16.mxu0 %v1000
      %1281 = vmatmul.mubr.bf16.gmra.mrb[0].mxu0 %v739
      %v1282 = vpop.f32.mrb[0].mxu0
      %v1283 = vadd.f32 0.0, %v1282
      %v1284 = vpop.f32.mrb[0].mxu0
      %v1285 = vpop.f32.mrb[0].mxu0
      %v1286 = vadd.f32 0.0, %v1285
      %v1287 = vpop.f32.mrb[0].mxu0
      %1288 = vmatprep.mubr.bf16.mxu0 %v1003
      %1289 = vmatmul.mubr.bf16.gmra.mrb[0].mxu0 %v741
      %v1290 = vpop.f32.mrb[0].mxu0
      %v1291 = vadd.f32 0.0, %v1290
      %v1292 = vpop.f32.mrb[0].mxu0
      %v1293 = vpop.f32.mrb[0].mxu0
      %v1294 = vadd.f32 0.0, %v1293
      %v1295 = vpop.f32.mrb[0].mxu0
      %1296 = vmatprep.mubr.bf16.mxu0 %v1006
      %1297 = vmatmul.mubr.bf16.gmra.mrb[0].mxu0 %v743
      %v1298 = vpop.f32.mrb[0].mxu0
      %v1299 = vadd.f32 0.0, %v1298
      %v1300 = vpop.f32.mrb[0].mxu0
      %v1301 = vpop.f32.mrb[0].mxu0
      %v1302 = vadd.f32 0.0, %v1301
      %v1303 = vpop.f32.mrb[0].mxu0
      %1304 = vmatprep.mubr.bf16.mxu0 %v1009
      %1305 = vmatmul.mubr.bf16.gmra.mrb[0].mxu0 %v745
      %v1306 = vpop.f32.mrb[0].mxu0
      %v1307 = vadd.f32 0.0, %v1306
      %v1308 = vpop.f32.mrb[0].mxu0
      %v1309 = vpop.f32.mrb[0].mxu0
      %v1310 = vadd.f32 0.0, %v1309
      %v1311 = vpop.f32.mrb[0].mxu0
      %1312 = vmatprep.mubr.bf16.mxu0 %v1012
      %1313 = vmatmul.mubr.bf16.gmra.mrb[0].mxu0 %v747
      %v1314 = vpop.f32.mrb[0].mxu0
      %v1315 = vadd.f32 0.0, %v1314
      %v1316 = vpop.f32.mrb[0].mxu0
      %v1317 = vpop.f32.mrb[0].mxu0
      %v1318 = vadd.f32 0.0, %v1317
      %v1319 = vpop.f32.mrb[0].mxu0
      %1320 = vmatprep.mubr.bf16.mxu0 %v1015
      %1321 = vmatmul.mubr.bf16.gmra.mrb[0].mxu0 %v749
      %v1322 = vpop.f32.mrb[0].mxu0
      %v1323 = vadd.f32 0.0, %v1322
      %v1324 = vpop.f32.mrb[0].mxu0
      %v1325 = vpop.f32.mrb[0].mxu0
      %v1326 = vadd.f32 0.0, %v1325
      %v1327 = vpop.f32.mrb[0].mxu0
      %1328 = vmatprep.mubr.bf16.mxu0 %v1018
      %1329 = vmatmul.mubr.bf16.gmra.mrb[0].mxu0 %v751
      %v1330 = vpop.f32.mrb[0].mxu0
      %v1331 = vadd.f32 0.0, %v1330
      %v1332 = vpop.f32.mrb[0].mxu0
      %v1333 = vpop.f32.mrb[0].mxu0
      %v1334 = vadd.f32 0.0, %v1333
      %v1335 = vpop.f32.mrb[0].mxu0
      %1336 = vmatprep.mubr.bf16.mxu0 %v1021
      %1337 = vmatmul.mubr.bf16.gmra.mrb[0].mxu0 %v753
      %v1338 = vpop.f32.mrb[0].mxu0
      %v1339 = vadd.f32 0.0, %v1338
      %v1340 = vpop.f32.mrb[0].mxu0
      %v1341 = vpop.f32.mrb[0].mxu0
      %v1342 = vadd.f32 0.0, %v1341
      %v1343 = vpop.f32.mrb[0].mxu0
      %1344 = vmatprep.mubr.bf16.mxu0 %v1024
      %1345 = vmatmul.mubr.bf16.gmra.mrb[0].mxu0 %v755
      %v1346 = vpop.f32.mrb[0].mxu0
      %v1347 = vadd.f32 0.0, %v1346
      %v1348 = vpop.f32.mrb[0].mxu0
      %v1349 = vpop.f32.mrb[0].mxu0
      %v1350 = vadd.f32 0.0, %v1349
      %v1351 = vpop.f32.mrb[0].mxu0
      %1352 = vmatprep.mubr.bf16.mxu0 %v1027
      %1353 = vmatmul.mubr.bf16.gmra.mrb[0].mxu0 %v757
      %v1354 = vpop.f32.mrb[0].mxu0
      %v1355 = vadd.f32 0.0, %v1354
      %v1356 = vpop.f32.mrb[0].mxu0
      %v1357 = vpop.f32.mrb[0].mxu0
      %v1358 = vadd.f32 0.0, %v1357
      %v1359 = vpop.f32.mrb[0].mxu0
      %1360 = vmatprep.mubr.bf16.mxu0 %v1030
      %1361 = vmatmul.mubr.bf16.gmra.mrb[0].mxu0 %v759
      %v1362 = vpop.f32.mrb[0].mxu0
      %v1363 = vadd.f32 0.0, %v1362
      %v1364 = vpop.f32.mrb[0].mxu0
      %v1365 = vpop.f32.mrb[0].mxu0
      %v1366 = vadd.f32 0.0, %v1365
      %v1367 = vpop.f32.mrb[0].mxu0
      %1368 = vmatprep.mubr.bf16.mxu0 %v1033
      %1369 = vmatmul.mubr.bf16.gmra.mrb[0].mxu0 %v761
      %v1370 = vpop.f32.mrb[0].mxu0
      %v1371 = vadd.f32 0.0, %v1370
      %v1372 = vpop.f32.mrb[0].mxu0
      %v1373 = vpop.f32.mrb[0].mxu0
      %v1374 = vadd.f32 0.0, %v1373
      %v1375 = vpop.f32.mrb[0].mxu0
      %1376 = vmatprep.mubr.bf16.mxu0 %v1036
      %1377 = vmatmul.mubr.bf16.gmra.mrb[0].mxu0 %v763
      %v1378 = vpop.f32.mrb[0].mxu0
      %v1379 = vadd.f32 0.0, %v1378
      %v1380 = vpop.f32.mrb[0].mxu0
      %v1381 = vpop.f32.mrb[0].mxu0
      %v1382 = vadd.f32 0.0, %v1381
      %v1383 = vpop.f32.mrb[0].mxu0
      %1384 = vmatprep.mubr.bf16.mxu0 %v1039
      %1385 = vmatmul.mubr.bf16.gmra.mrb[0].mxu0 %v765
      %v1386 = vpop.f32.mrb[0].mxu0
      %v1387 = vadd.f32 0.0, %v1386
      %v1388 = vpop.f32.mrb[0].mxu0
      %v1389 = vpop.f32.mrb[0].mxu0
      %v1390 = vadd.f32 0.0, %v1389
      %v1391 = vpop.f32.mrb[0].mxu0
      %1392 = vmatprep.mubr.bf16.mxu0 %v1042
      %1393 = vmatmul.mubr.bf16.gmra.mrb[0].mxu0 %v767
      %v1394 = vpop.f32.mrb[0].mxu0
      %v1395 = vadd.f32 0.0, %v1394
      %v1396 = vpop.f32.mrb[0].mxu0
      %v1397 = vpop.f32.mrb[0].mxu0
      %v1398 = vadd.f32 0.0, %v1397
      %v1399 = vpop.f32.mrb[0].mxu0
      %1400 = vmatprep.mubr.bf16.mxu0 %v1045
      %1401 = vmatmul.mubr.bf16.gmra.mrb[0].mxu0 %v769
      %v1402 = vpop.f32.mrb[0].mxu0
      %v1403 = vadd.f32 0.0, %v1402
      %v1404 = vpop.f32.mrb[0].mxu0
      %v1405 = vpop.f32.mrb[0].mxu0
      %v1406 = vadd.f32 0.0, %v1405
      %v1407 = vpop.f32.mrb[0].mxu0
      %1408 = vmatprep.mubr.bf16.mxu0 %v1048
      %1409 = vmatmul.mubr.bf16.gmra.mrb[0].mxu0 %v771
      %v1410 = vpop.f32.mrb[0].mxu0
      %v1411 = vadd.f32 0.0, %v1410
      %v1412 = vpop.f32.mrb[0].mxu0
      %v1413 = vpop.f32.mrb[0].mxu0
      %v1414 = vadd.f32 0.0, %v1413
      %v1415 = vpop.f32.mrb[0].mxu0
      %1416 = vmatprep.mubr.bf16.mxu0 %v1051
      %1417 = vmatmul.mubr.bf16.gmra.mrb[0].mxu0 %v773
      %v1418 = vpop.f32.mrb[0].mxu0
      %v1419 = vadd.f32 0.0, %v1418
      %v1420 = vpop.f32.mrb[0].mxu0
      %v1421 = vpop.f32.mrb[0].mxu0
      %v1422 = vadd.f32 0.0, %v1421
      %v1423 = vpop.f32.mrb[0].mxu0
      %1424 = vmatprep.mubr.bf16.mxu0 %v1054
      %1425 = vmatmul.mubr.bf16.gmra.mrb[0].mxu0 %v775
      %v1426 = vpop.f32.mrb[0].mxu0
      %v1427 = vadd.f32 0.0, %v1426
      %v1428 = vpop.f32.mrb[0].mxu0
      %v1429 = vpop.f32.mrb[0].mxu0
      %v1430 = vadd.f32 0.0, %v1429
      %v1431 = vpop.f32.mrb[0].mxu0
      %1432 = vmatprep.mubr.bf16.mxu0 %v1057
      %1433 = vmatmul.mubr.bf16.gmra.mrb[0].mxu0 %v777
      %v1434 = vpop.f32.mrb[0].mxu0
      %v1435 = vadd.f32 0.0, %v1434
      %v1436 = vpop.f32.mrb[0].mxu0
      %v1437 = vpop.f32.mrb[0].mxu0
      %v1438 = vadd.f32 0.0, %v1437
      %v1439 = vpop.f32.mrb[0].mxu0
      %1440 = vmatprep.mubr.bf16.mxu0 %v1060
      %1441 = vmatmul.mubr.bf16.gmra.mrb[0].mxu0 %v779
      %v1442 = vpop.f32.mrb[0].mxu0
      %v1443 = vadd.f32 0.0, %v1442
      %v1444 = vpop.f32.mrb[0].mxu0
      %v1445 = vpop.f32.mrb[0].mxu0
      %v1446 = vadd.f32 0.0, %v1445
      %v1447 = vpop.f32.mrb[0].mxu0
      %1448 = vmatprep.mubr.bf16.mxu0 %v1063
      %1449 = vmatmul.mubr.bf16.gmra.mrb[0].mxu0 %v781
      %v1450 = vpop.f32.mrb[0].mxu0
      %v1451 = vadd.f32 0.0, %v1450
      %v1452 = vpop.f32.mrb[0].mxu0
      %v1453 = vpop.f32.mrb[0].mxu0
      %v1454 = vadd.f32 0.0, %v1453
      %v1455 = vpop.f32.mrb[0].mxu0
      %1456 = vmatprep.mubr.bf16.mxu0 %v1066
      %1457 = vmatmul.mubr.bf16.gmra.mrb[0].mxu0 %v783
      %v1458 = vpop.f32.mrb[0].mxu0
      %v1459 = vadd.f32 0.0, %v1458
      %v1460 = vpop.f32.mrb[0].mxu0
      %v1461 = vpop.f32.mrb[0].mxu0
      %v1462 = vadd.f32 0.0, %v1461
      %v1463 = vpop.f32.mrb[0].mxu0
      %1464 = vmatprep.mubr.bf16.mxu0 %v1069
      %1465 = vmatmul.mubr.bf16.gmra.mrb[0].mxu0 %v785
      %v1466 = vpop.f32.mrb[0].mxu0
      %v1467 = vadd.f32 0.0, %v1466
      %v1468 = vpop.f32.mrb[0].mxu0
      %v1469 = vpop.f32.mrb[0].mxu0
      %v1470 = vadd.f32 0.0, %v1469
      %v1471 = vpop.f32.mrb[0].mxu0
      %1472 = vmatprep.mubr.bf16.mxu0 %v1072
      %1473 = vmatmul.mubr.bf16.gmra.mrb[0].mxu0 %v787
      %v1474 = vpop.f32.mrb[0].mxu0
      %v1475 = vadd.f32 0.0, %v1474
      %v1476 = vpop.f32.mrb[0].mxu0
      %v1477 = vpop.f32.mrb[0].mxu0
      %v1478 = vadd.f32 0.0, %v1477
      %v1479 = vpop.f32.mrb[0].mxu0
      %1480 = vmatprep.mubr.bf16.mxu0 %v1075
      %1481 = vmatmul.mubr.bf16.gmra.mrb[0].mxu0 %v789
      %v1482 = vpop.f32.mrb[0].mxu0
      %v1483 = vadd.f32 0.0, %v1482
      %v1484 = vpop.f32.mrb[0].mxu0
      %v1485 = vpop.f32.mrb[0].mxu0
      %v1486 = vadd.f32 0.0, %v1485
      %v1487 = vpop.f32.mrb[0].mxu0
      %1488 = vmatprep.mubr.bf16.mxu0 %v1078
      %1489 = vmatmul.mubr.bf16.gmra.mrb[0].mxu0 %v791
      %v1490 = vpop.f32.mrb[0].mxu0
      %v1491 = vadd.f32 0.0, %v1490
      %v1492 = vpop.f32.mrb[0].mxu0
      %v1493 = vpop.f32.mrb[0].mxu0
      %v1494 = vadd.f32 0.0, %v1493
      %v1495 = vpop.f32.mrb[0].mxu0
      %1496 = vmatprep.mubr.bf16.mxu0 %v1081
      %1497 = vmatmul.mubr.bf16.gmra.mrb[0].mxu0 %v793
      %v1498 = vpop.f32.mrb[0].mxu0
      %v1499 = vadd.f32 0.0, %v1498
      %v1500 = vpop.f32.mrb[0].mxu0
      %v1501 = vpop.f32.mrb[0].mxu0
      %v1502 = vadd.f32 0.0, %v1501
      %v1503 = vpop.f32.mrb[0].mxu0
      %1504 = vmatprep.mubr.bf16.mxu0 %v1084
      %1505 = vmatmul.mubr.bf16.gmra.mrb[0].mxu0 %v795
      %v1506 = vpop.f32.mrb[0].mxu0
      %v1507 = vadd.f32 0.0, %v1506
      %v1508 = vpop.f32.mrb[0].mxu0
      %v1509 = vpop.f32.mrb[0].mxu0
      %v1510 = vadd.f32 0.0, %v1509
      %v1511 = vpop.f32.mrb[0].mxu0
      %1512 = vmatprep.mubr.bf16.mxu0 %v1087
      %1513 = vmatmul.mubr.bf16.gmra.mrb[0].mxu0 %v797
      %v1514 = vpop.f32.mrb[0].mxu0
      %v1515 = vadd.f32 0.0, %v1514
      %v1516 = vpop.f32.mrb[0].mxu0
      %v1517 = vpop.f32.mrb[0].mxu0
      %v1518 = vadd.f32 0.0, %v1517
      %v1519 = vpop.f32.mrb[0].mxu0
      %1520 = vmatprep.mubr.bf16.mxu0 %v1090
      %1521 = vmatmul.mubr.bf16.gmra.mrb[0].mxu0 %v799
      %v1522 = vpop.f32.mrb[0].mxu0
      %v1523 = vadd.f32 0.0, %v1522
      %v1524 = vpop.f32.mrb[0].mxu0
      %v1525 = vpop.f32.mrb[0].mxu0
      %v1526 = vadd.f32 0.0, %v1525
      %v1527 = vpop.f32.mrb[0].mxu0
      %1528 = vmatprep.mubr.bf16.mxu0 %v1093
      %1529 = vmatmul.mubr.bf16.gmra.mrb[0].mxu0 %v801
      %v1530 = vpop.f32.mrb[0].mxu0
      %v1531 = vadd.f32 0.0, %v1530
      %v1532 = vpop.f32.mrb[0].mxu0
      %v1533 = vpop.f32.mrb[0].mxu0
      %v1534 = vadd.f32 0.0, %v1533
      %v1535 = vpop.f32.mrb[0].mxu0
      %1536 = vmatprep.mubr.bf16.mxu0 %v1096
      %1537 = vmatmul.mubr.bf16.gmra.mrb[0].mxu0 %v803
      %v1538 = vpop.f32.mrb[0].mxu0
      %v1539 = vadd.f32 0.0, %v1538
      %v1540 = vpop.f32.mrb[0].mxu0
      %v1541 = vpop.f32.mrb[0].mxu0
      %v1542 = vadd.f32 0.0, %v1541
      %v1543 = vpop.f32.mrb[0].mxu0
      %1544 = vmatprep.mubr.bf16.mxu0 %v1099
      %1545 = vmatmul.mubr.bf16.gmra.mrb[0].mxu0 %v805
      %v1546 = vpop.f32.mrb[0].mxu0
      %v1547 = vadd.f32 0.0, %v1546
      %v1548 = vpop.f32.mrb[0].mxu0
      %v1549 = vpop.f32.mrb[0].mxu0
      %v1550 = vadd.f32 0.0, %v1549
      %v1551 = vpop.f32.mrb[0].mxu0
      %1552 = vmatprep.mubr.bf16.mxu0 %v1102
      %1553 = vmatmul.mubr.bf16.gmra.mrb[0].mxu0 %v807
      %v1554 = vpop.f32.mrb[0].mxu0
      %v1555 = vadd.f32 0.0, %v1554
      %v1556 = vpop.f32.mrb[0].mxu0
      %v1557 = vpop.f32.mrb[0].mxu0
      %v1558 = vadd.f32 0.0, %v1557
      %v1559 = vpop.f32.mrb[0].mxu0
      %1560 = vmatprep.mubr.bf16.mxu0 %v1105
      %1561 = vmatmul.mubr.bf16.gmra.mrb[0].mxu0 %v809
      %v1562 = vpop.f32.mrb[0].mxu0
      %v1563 = vadd.f32 0.0, %v1562
      %v1564 = vpop.f32.mrb[0].mxu0
      %v1565 = vpop.f32.mrb[0].mxu0
      %v1566 = vadd.f32 0.0, %v1565
      %v1567 = vpop.f32.mrb[0].mxu0
      %1568 = vmatprep.mubr.bf16.mxu0 %v1108
      %1569 = vmatmul.mubr.bf16.gmra.mrb[0].mxu0 %v811
      %v1570 = vpop.f32.mrb[0].mxu0
      %v1571 = vadd.f32 0.0, %v1570
      %v1572 = vpop.f32.mrb[0].mxu0
      %v1573 = vpop.f32.mrb[0].mxu0
      %v1574 = vadd.f32 0.0, %v1573
      %v1575 = vpop.f32.mrb[0].mxu0
      %1576 = vmatprep.mubr.bf16.mxu0 %v1111
      %1577 = vmatmul.mubr.bf16.gmra.mrb[0].mxu0 %v813
      %v1578 = vpop.f32.mrb[0].mxu0
      %v1579 = vadd.f32 0.0, %v1578
      %v1580 = vpop.f32.mrb[0].mxu0
      %v1581 = vpop.f32.mrb[0].mxu0
      %v1582 = vadd.f32 0.0, %v1581
      %v1583 = vpop.f32.mrb[0].mxu0
      %1584 = vmatprep.mubr.bf16.mxu0 %v1114
      %1585 = vmatmul.mubr.bf16.gmra.mrb[0].mxu0 %v815
      %v1586 = vpop.f32.mrb[0].mxu0
      %v1587 = vadd.f32 0.0, %v1586
      %v1588 = vpop.f32.mrb[0].mxu0
      %v1589 = vpop.f32.mrb[0].mxu0
      %v1590 = vadd.f32 0.0, %v1589
      %v1591 = vpop.f32.mrb[0].mxu0
      %1592 = vmatprep.mubr.bf16.mxu0 %v1117
      %1593 = vmatmul.mubr.bf16.gmra.mrb[0].mxu0 %v817
      %v1594 = vpop.f32.mrb[0].mxu0
      %v1595 = vadd.f32 0.0, %v1594
      %v1596 = vpop.f32.mrb[0].mxu0
      %v1597 = vpop.f32.mrb[0].mxu0
      %v1598 = vadd.f32 0.0, %v1597
      %v1599 = vpop.f32.mrb[0].mxu0
      %1600 = vmatprep.mubr.bf16.mxu0 %v1120
      %1601 = vmatmul.mubr.bf16.gmra.mrb[0].mxu0 %v819
      %v1602 = vpop.f32.mrb[0].mxu0
      %v1603 = vadd.f32 0.0, %v1602
      %v1604 = vpop.f32.mrb[0].mxu0
      %v1605 = vpop.f32.mrb[0].mxu0
      %v1606 = vadd.f32 0.0, %v1605
      %v1607 = vpop.f32.mrb[0].mxu0
      %1608 = vmatprep.mubr.bf16.mxu0 %v1123
      %1609 = vmatmul.mubr.bf16.gmra.mrb[0].mxu0 %v821
      %v1610 = vpop.f32.mrb[0].mxu0
      %v1611 = vadd.f32 0.0, %v1610
      %v1612 = vpop.f32.mrb[0].mxu0
      %v1613 = vpop.f32.mrb[0].mxu0
      %v1614 = vadd.f32 0.0, %v1613
      %v1615 = vpop.f32.mrb[0].mxu0
      %1616 = vmatprep.mubr.bf16.mxu0 %v1126
      %1617 = vmatmul.mubr.bf16.gmra.mrb[0].mxu0 %v823
      %v1618 = vpop.f32.mrb[0].mxu0
      %v1619 = vadd.f32 0.0, %v1618
      %v1620 = vpop.f32.mrb[0].mxu0
      %v1621 = vpop.f32.mrb[0].mxu0
      %v1622 = vadd.f32 0.0, %v1621
      %v1623 = vpop.f32.mrb[0].mxu0
      %1624 = vmatprep.mubr.bf16.mxu0 %v1129
      %1625 = vmatmul.mubr.bf16.gmra.mrb[0].mxu0 %v825
      %v1626 = vpop.f32.mrb[0].mxu0
      %v1627 = vadd.f32 0.0, %v1626
      %v1628 = vpop.f32.mrb[0].mxu0
      %v1629 = vpop.f32.mrb[0].mxu0
      %v1630 = vadd.f32 0.0, %v1629
      %v1631 = vpop.f32.mrb[0].mxu0
      %1632 = vmatprep.mubr.bf16.mxu0 %v1132
      %1633 = vmatmul.mubr.bf16.gmra.mrb[0].mxu0 %v827
      %v1634 = vpop.f32.mrb[0].mxu0
      %v1635 = vadd.f32 0.0, %v1634
      %v1636 = vpop.f32.mrb[0].mxu0
      %v1637 = vpop.f32.mrb[0].mxu0
      %v1638 = vadd.f32 0.0, %v1637
      %v1639 = vpop.f32.mrb[0].mxu0
      %1640 = vmatprep.mubr.bf16.mxu0 %v1135
      %1641 = vmatmul.mubr.bf16.gmra.mrb[0].mxu0 %v829
      %v1642 = vpop.f32.mrb[0].mxu0
      %v1643 = vadd.f32 0.0, %v1642
      %v1644 = vpop.f32.mrb[0].mxu0
      %v1645 = vpop.f32.mrb[0].mxu0
      %v1646 = vadd.f32 0.0, %v1645
      %v1647 = vpop.f32.mrb[0].mxu0
      %1648 = vmatprep.mubr.bf16.mxu0 %v1138
      %1649 = vmatmul.mubr.bf16.gmra.mrb[0].mxu0 %v831
      %v1650 = vpop.f32.mrb[0].mxu0
      %v1651 = vadd.f32 0.0, %v1650
      %v1652 = vpop.f32.mrb[0].mxu0
      %v1653 = vpop.f32.mrb[0].mxu0
      %v1654 = vadd.f32 0.0, %v1653
      %v1655 = vpop.f32.mrb[0].mxu0
      %1656 = vmatprep.mubr.bf16.mxu0 %v1141
      %1657 = vmatmul.mubr.bf16.gmra.mrb[0].mxu0 %v833
      %v1658 = vpop.f32.mrb[0].mxu0
      %v1659 = vadd.f32 0.0, %v1658
      %v1660 = vpop.f32.mrb[0].mxu0
      %v1661 = vpop.f32.mrb[0].mxu0
      %v1662 = vadd.f32 0.0, %v1661
      %v1663 = vpop.f32.mrb[0].mxu0
      %1664 = vmatprep.mubr.bf16.mxu0 %v1144
      %1665 = vmatmul.mubr.bf16.gmra.mrb[0].mxu0 %v835
      %v1666 = vpop.f32.mrb[0].mxu0
      %v1667 = vadd.f32 0.0, %v1666
      %v1668 = vpop.f32.mrb[0].mxu0
      %v1669 = vpop.f32.mrb[0].mxu0
      %v1670 = vadd.f32 0.0, %v1669
      %v1671 = vpop.f32.mrb[0].mxu0
      %1672 = vmatprep.mubr.bf16.mxu0 %v1147
      %1673 = vmatmul.mubr.bf16.gmra.mrb[0].mxu0 %v837
      %v1674 = vpop.f32.mrb[0].mxu0
      %v1675 = vadd.f32 0.0, %v1674
      %v1676 = vpop.f32.mrb[0].mxu0
      %v1677 = vpop.f32.mrb[0].mxu0
      %v1678 = vadd.f32 0.0, %v1677
      %v1679 = vpop.f32.mrb[0].mxu0
      %1680 = vmatprep.mubr.bf16.mxu0 %v1150
      %1681 = vmatmul.mubr.bf16.gmra.mrb[0].mxu0 %v839
      %v1682 = vpop.f32.mrb[0].mxu0
      %v1683 = vadd.f32 0.0, %v1682
      %v1684 = vpop.f32.mrb[0].mxu0
      %v1685 = vpop.f32.mrb[0].mxu0
      %v1686 = vadd.f32 0.0, %v1685
      %v1687 = vpop.f32.mrb[0].mxu0
      %1688 = vmatprep.mubr.bf16.mxu0 %v1153
      %1689 = vmatmul.mubr.bf16.gmra.mrb[0].mxu0 %v841
      %v1690 = vpop.f32.mrb[0].mxu0
      %v1691 = vadd.f32 0.0, %v1690
      %v1692 = vpop.f32.mrb[0].mxu0
      %v1693 = vpop.f32.mrb[0].mxu0
      %v1694 = vadd.f32 0.0, %v1693
      %v1695 = vpop.f32.mrb[0].mxu0
      %1696 = vmatprep.mubr.bf16.mxu0 %v1156
      %1697 = vmatmul.mubr.bf16.gmra.mrb[0].mxu0 %v843
      %v1698 = vpop.f32.mrb[0].mxu0
      %v1699 = vadd.f32 0.0, %v1698
      %v1700 = vpop.f32.mrb[0].mxu0
      %v1701 = vpop.f32.mrb[0].mxu0
      %v1702 = vadd.f32 0.0, %v1701
      %v1703 = vpop.f32.mrb[0].mxu0
      %1704 = vmatprep.mubr.bf16.mxu0 %v1159
      %1705 = vmatmul.mubr.bf16.gmra.mrb[0].mxu0 %v845
      %v1706 = vpop.f32.mrb[0].mxu0
      %v1707 = vadd.f32 0.0, %v1706
      %v1708 = vpop.f32.mrb[0].mxu0
      %v1709 = vpop.f32.mrb[0].mxu0
      %v1710 = vadd.f32 0.0, %v1709
      %v1711 = vpop.f32.mrb[0].mxu0
      %1712 = vdwg.mxu0
      %v1713 = vmax.f32 %v1203, 0.0
      %v1714 = vmax.f32 %v1206, 0.0
      %v1715 = vmax.f32 %v1211, 0.0
      %v1716 = vmax.f32 %v1214, 0.0
      %v1717 = vmax.f32 %v1219, 0.0
      %v1718 = vmax.f32 %v1222, 0.0
      %v1719 = vmax.f32 %v1227, 0.0
      %v1720 = vmax.f32 %v1230, 0.0
      %v1721 = vmax.f32 %v1235, 0.0
      %v1722 = vmax.f32 %v1238, 0.0
      %v1723 = vmax.f32 %v1243, 0.0
      %v1724 = vmax.f32 %v1246, 0.0
      %v1725 = vmax.f32 %v1251, 0.0
      %v1726 = vmax.f32 %v1254, 0.0
      %v1727 = vmax.f32 %v1259, 0.0
      %v1728 = vmax.f32 %v1262, 0.0
      %v1729 = vmax.f32 %v1267, 0.0
      %v1730 = vmax.f32 %v1270, 0.0
      %v1731 = vmax.f32 %v1275, 0.0
      %v1732 = vmax.f32 %v1278, 0.0
      %v1733 = vmax.f32 %v1283, 0.0
      %v1734 = vmax.f32 %v1286, 0.0
      %v1735 = vmax.f32 %v1291, 0.0
      %v1736 = vmax.f32 %v1294, 0.0
      %v1737 = vmax.f32 %v1299, 0.0
      %v1738 = vmax.f32 %v1302, 0.0
      %v1739 = vmax.f32 %v1307, 0.0
      %v1740 = vmax.f32 %v1310, 0.0
      %v1741 = vmax.f32 %v1315, 0.0
      %v1742 = vmax.f32 %v1318, 0.0
      %v1743 = vmax.f32 %v1323, 0.0
      %v1744 = vmax.f32 %v1326, 0.0
      %v1745 = vmax.f32 %v1331, 0.0
      %v1746 = vmax.f32 %v1334, 0.0
      %v1747 = vmax.f32 %v1339, 0.0
      %v1748 = vmax.f32 %v1342, 0.0
      %v1749 = vmax.f32 %v1347, 0.0
      %v1750 = vmax.f32 %v1350, 0.0
      %v1751 = vmax.f32 %v1355, 0.0
      %v1752 = vmax.f32 %v1358, 0.0
      %v1753 = vmax.f32 %v1363, 0.0
      %v1754 = vmax.f32 %v1366, 0.0
      %v1755 = vmax.f32 %v1371, 0.0
      %v1756 = vmax.f32 %v1374, 0.0
      %v1757 = vmax.f32 %v1379, 0.0
      %v1758 = vmax.f32 %v1382, 0.0
      %v1759 = vmax.f32 %v1387, 0.0
      %v1760 = vmax.f32 %v1390, 0.0
      %v1761 = vmax.f32 %v1395, 0.0
      %v1762 = vmax.f32 %v1398, 0.0
      %v1763 = vmax.f32 %v1403, 0.0
      %v1764 = vmax.f32 %v1406, 0.0
      %v1765 = vmax.f32 %v1411, 0.0
      %v1766 = vmax.f32 %v1414, 0.0
      %v1767 = vmax.f32 %v1419, 0.0
      %v1768 = vmax.f32 %v1422, 0.0
      %v1769 = vmax.f32 %v1427, 0.0
      %v1770 = vmax.f32 %v1430, 0.0
      %v1771 = vmax.f32 %v1435, 0.0
      %v1772 = vmax.f32 %v1438, 0.0
      %v1773 = vmax.f32 %v1443, 0.0
      %v1774 = vmax.f32 %v1446, 0.0
      %v1775 = vmax.f32 %v1451, 0.0
      %v1776 = vmax.f32 %v1454, 0.0
      %v1777 = vmax.f32 %v1459, 0.0
      %v1778 = vmax.f32 %v1462, 0.0
      %v1779 = vmax.f32 %v1467, 0.0
      %v1780 = vmax.f32 %v1470, 0.0
      %v1781 = vmax.f32 %v1475, 0.0
      %v1782 = vmax.f32 %v1478, 0.0
      %v1783 = vmax.f32 %v1483, 0.0
      %v1784 = vmax.f32 %v1486, 0.0
      %v1785 = vmax.f32 %v1491, 0.0
      %v1786 = vmax.f32 %v1494, 0.0
      %v1787 = vmax.f32 %v1499, 0.0
      %v1788 = vmax.f32 %v1502, 0.0
      %v1789 = vmax.f32 %v1507, 0.0
      %v1790 = vmax.f32 %v1510, 0.0
      %v1791 = vmax.f32 %v1515, 0.0
      %v1792 = vmax.f32 %v1518, 0.0
      %v1793 = vmax.f32 %v1523, 0.0
      %v1794 = vmax.f32 %v1526, 0.0
      %v1795 = vmax.f32 %v1531, 0.0
      %v1796 = vmax.f32 %v1534, 0.0
      %v1797 = vmax.f32 %v1539, 0.0
      %v1798 = vmax.f32 %v1542, 0.0
      %v1799 = vmax.f32 %v1547, 0.0
      %v1800 = vmax.f32 %v1550, 0.0
      %v1801 = vmax.f32 %v1555, 0.0
      %v1802 = vmax.f32 %v1558, 0.0
      %v1803 = vmax.f32 %v1563, 0.0
      %v1804 = vmax.f32 %v1566, 0.0
      %v1805 = vmax.f32 %v1571, 0.0
      %v1806 = vmax.f32 %v1574, 0.0
      %v1807 = vmax.f32 %v1579, 0.0
      %v1808 = vmax.f32 %v1582, 0.0
      %v1809 = vmax.f32 %v1587, 0.0
      %v1810 = vmax.f32 %v1590, 0.0
      %v1811 = vmax.f32 %v1595, 0.0
      %v1812 = vmax.f32 %v1598, 0.0
      %v1813 = vmax.f32 %v1603, 0.0
      %v1814 = vmax.f32 %v1606, 0.0
      %v1815 = vmax.f32 %v1611, 0.0
      %v1816 = vmax.f32 %v1614, 0.0
      %v1817 = vmax.f32 %v1619, 0.0
      %v1818 = vmax.f32 %v1622, 0.0
      %v1819 = vmax.f32 %v1627, 0.0
      %v1820 = vmax.f32 %v1630, 0.0
      %v1821 = vmax.f32 %v1635, 0.0
      %v1822 = vmax.f32 %v1638, 0.0
      %v1823 = vmax.f32 %v1643, 0.0
      %v1824 = vmax.f32 %v1646, 0.0
      %v1825 = vmax.f32 %v1651, 0.0
      %v1826 = vmax.f32 %v1654, 0.0
      %v1827 = vmax.f32 %v1659, 0.0
      %v1828 = vmax.f32 %v1662, 0.0
      %v1829 = vmax.f32 %v1667, 0.0
      %v1830 = vmax.f32 %v1670, 0.0
      %v1831 = vmax.f32 %v1675, 0.0
      %v1832 = vmax.f32 %v1678, 0.0
      %v1833 = vmax.f32 %v1683, 0.0
      %v1834 = vmax.f32 %v1686, 0.0
      %v1835 = vmax.f32 %v1691, 0.0
      %v1836 = vmax.f32 %v1694, 0.0
      %v1837 = vmax.f32 %v1699, 0.0
      %v1838 = vmax.f32 %v1702, 0.0
      %v1839 = vmax.f32 %v1707, 0.0
      %v1840 = vmax.f32 %v1710, 0.0
      %v1841 = vpack.c.bf16 %v1714, %v1713
      %v1842 = vpack.c.bf16 %v1716, %v1715
      %v1843 = vpack.c.bf16 %v1718, %v1717
      %v1844 = vpack.c.bf16 %v1720, %v1719
      %v1845 = vpack.c.bf16 %v1722, %v1721
      %v1846 = vpack.c.bf16 %v1724, %v1723
      %v1847 = vpack.c.bf16 %v1726, %v1725
      %v1848 = vpack.c.bf16 %v1728, %v1727
      %v1849 = vpack.c.bf16 %v1730, %v1729
      %v1850 = vpack.c.bf16 %v1732, %v1731
      %v1851 = vpack.c.bf16 %v1734, %v1733
      %v1852 = vpack.c.bf16 %v1736, %v1735
      %v1853 = vpack.c.bf16 %v1738, %v1737
      %v1854 = vpack.c.bf16 %v1740, %v1739
      %v1855 = vpack.c.bf16 %v1742, %v1741
      %v1856 = vpack.c.bf16 %v1744, %v1743
      %v1857 = vpack.c.bf16 %v1746, %v1745
      %v1858 = vpack.c.bf16 %v1748, %v1747
      %v1859 = vpack.c.bf16 %v1750, %v1749
      %v1860 = vpack.c.bf16 %v1752, %v1751
      %v1861 = vpack.c.bf16 %v1754, %v1753
      %v1862 = vpack.c.bf16 %v1756, %v1755
      %v1863 = vpack.c.bf16 %v1758, %v1757
      %v1864 = vpack.c.bf16 %v1760, %v1759
      %v1865 = vpack.c.bf16 %v1762, %v1761
      %v1866 = vpack.c.bf16 %v1764, %v1763
      %v1867 = vpack.c.bf16 %v1766, %v1765
      %v1868 = vpack.c.bf16 %v1768, %v1767
      %v1869 = vpack.c.bf16 %v1770, %v1769
      %v1870 = vpack.c.bf16 %v1772, %v1771
      %v1871 = vpack.c.bf16 %v1774, %v1773
      %v1872 = vpack.c.bf16 %v1776, %v1775
      %v1873 = vpack.c.bf16 %v1778, %v1777
      %v1874 = vpack.c.bf16 %v1780, %v1779
      %v1875 = vpack.c.bf16 %v1782, %v1781
      %v1876 = vpack.c.bf16 %v1784, %v1783
      %v1877 = vpack.c.bf16 %v1786, %v1785
      %v1878 = vpack.c.bf16 %v1788, %v1787
      %v1879 = vpack.c.bf16 %v1790, %v1789
      %v1880 = vpack.c.bf16 %v1792, %v1791
      %v1881 = vpack.c.bf16 %v1794, %v1793
      %v1882 = vpack.c.bf16 %v1796, %v1795
      %v1883 = vpack.c.bf16 %v1798, %v1797
      %v1884 = vpack.c.bf16 %v1800, %v1799
      %v1885 = vpack.c.bf16 %v1802, %v1801
      %v1886 = vpack.c.bf16 %v1804, %v1803
      %v1887 = vpack.c.bf16 %v1806, %v1805
      %v1888 = vpack.c.bf16 %v1808, %v1807
      %v1889 = vpack.c.bf16 %v1810, %v1809
      %v1890 = vpack.c.bf16 %v1812, %v1811
      %v1891 = vpack.c.bf16 %v1814, %v1813
      %v1892 = vpack.c.bf16 %v1816, %v1815
      %v1893 = vpack.c.bf16 %v1818, %v1817
      %v1894 = vpack.c.bf16 %v1820, %v1819
      %v1895 = vpack.c.bf16 %v1822, %v1821
      %v1896 = vpack.c.bf16 %v1824, %v1823
      %v1897 = vpack.c.bf16 %v1826, %v1825
      %v1898 = vpack.c.bf16 %v1828, %v1827
      %v1899 = vpack.c.bf16 %v1830, %v1829
      %v1900 = vpack.c.bf16 %v1832, %v1831
      %v1901 = vpack.c.bf16 %v1834, %v1833
      %v1902 = vpack.c.bf16 %v1836, %v1835
      %v1903 = vpack.c.bf16 %v1838, %v1837
      %v1904 = vpack.c.bf16 %v1840, %v1839
      %v1969 = vunpack.c.l.b16 %v1841
      %v1970 = vunpack.c.h.b16 %v1841
      %v1971 = vunpack.c.l.b16 %v1842
      %v1972 = vunpack.c.h.b16 %v1842
      %v1973 = vunpack.c.l.b16 %v1843
      %v1974 = vunpack.c.h.b16 %v1843
      %v1975 = vunpack.c.l.b16 %v1844
      %v1976 = vunpack.c.h.b16 %v1844
      %v1977 = vunpack.c.l.b16 %v1845
      %v1978 = vunpack.c.h.b16 %v1845
      %v1979 = vunpack.c.l.b16 %v1846
      %v1980 = vunpack.c.h.b16 %v1846
      %v1981 = vunpack.c.l.b16 %v1847
      %v1982 = vunpack.c.h.b16 %v1847
      %v1983 = vunpack.c.l.b16 %v1848
      %v1984 = vunpack.c.h.b16 %v1848
      %v1985 = vunpack.c.l.b16 %v1849
      %v1986 = vunpack.c.h.b16 %v1849
      %v1987 = vunpack.c.l.b16 %v1850
      %v1988 = vunpack.c.h.b16 %v1850
      %v1989 = vunpack.c.l.b16 %v1851
      %v1990 = vunpack.c.h.b16 %v1851
      %v1991 = vunpack.c.l.b16 %v1852
      %v1992 = vunpack.c.h.b16 %v1852
      %v1993 = vunpack.c.l.b16 %v1853
      %v1994 = vunpack.c.h.b16 %v1853
      %v1995 = vunpack.c.l.b16 %v1854
      %v1996 = vunpack.c.h.b16 %v1854
      %v1997 = vunpack.c.l.b16 %v1855
      %v1998 = vunpack.c.h.b16 %v1855
      %v1999 = vunpack.c.l.b16 %v1856
      %v2000 = vunpack.c.h.b16 %v1856
      %v2001 = vunpack.c.l.b16 %v1857
      %v2002 = vunpack.c.h.b16 %v1857
      %v2003 = vunpack.c.l.b16 %v1858
      %v2004 = vunpack.c.h.b16 %v1858
      %v2005 = vunpack.c.l.b16 %v1859
      %v2006 = vunpack.c.h.b16 %v1859
      %v2007 = vunpack.c.l.b16 %v1860
      %v2008 = vunpack.c.h.b16 %v1860
      %v2009 = vunpack.c.l.b16 %v1861
      %v2010 = vunpack.c.h.b16 %v1861
      %v2011 = vunpack.c.l.b16 %v1862
      %v2012 = vunpack.c.h.b16 %v1862
      %v2013 = vunpack.c.l.b16 %v1863
      %v2014 = vunpack.c.h.b16 %v1863
      %v2015 = vunpack.c.l.b16 %v1864
      %v2016 = vunpack.c.h.b16 %v1864
      %v2017 = vunpack.c.l.b16 %v1865
      %v2018 = vunpack.c.h.b16 %v1865
      %v2019 = vunpack.c.l.b16 %v1866
      %v2020 = vunpack.c.h.b16 %v1866
      %v2021 = vunpack.c.l.b16 %v1867
      %v2022 = vunpack.c.h.b16 %v1867
      %v2023 = vunpack.c.l.b16 %v1868
      %v2024 = vunpack.c.h.b16 %v1868
      %v2025 = vunpack.c.l.b16 %v1869
      %v2026 = vunpack.c.h.b16 %v1869
      %v2027 = vunpack.c.l.b16 %v1870
      %v2028 = vunpack.c.h.b16 %v1870
      %v2029 = vunpack.c.l.b16 %v1871
      %v2030 = vunpack.c.h.b16 %v1871
      %v2031 = vunpack.c.l.b16 %v1872
      %v2032 = vunpack.c.h.b16 %v1872
      %v2033 = vunpack.c.l.b16 %v1873
      %v2034 = vunpack.c.h.b16 %v1873
      %v2035 = vunpack.c.l.b16 %v1874
      %v2036 = vunpack.c.h.b16 %v1874
      %v2037 = vunpack.c.l.b16 %v1875
      %v2038 = vunpack.c.h.b16 %v1875
      %v2039 = vunpack.c.l.b16 %v1876
      %v2040 = vunpack.c.h.b16 %v1876
      %v2041 = vunpack.c.l.b16 %v1877
      %v2042 = vunpack.c.h.b16 %v1877
      %v2043 = vunpack.c.l.b16 %v1878
      %v2044 = vunpack.c.h.b16 %v1878
      %v2045 = vunpack.c.l.b16 %v1879
      %v2046 = vunpack.c.h.b16 %v1879
      %v2047 = vunpack.c.l.b16 %v1880
      %v2048 = vunpack.c.h.b16 %v1880
      %v2049 = vunpack.c.l.b16 %v1881
      %v2050 = vunpack.c.h.b16 %v1881
      %v2051 = vunpack.c.l.b16 %v1882
      %v2052 = vunpack.c.h.b16 %v1882
      %v2053 = vunpack.c.l.b16 %v1883
      %v2054 = vunpack.c.h.b16 %v1883
      %v2055 = vunpack.c.l.b16 %v1884
      %v2056 = vunpack.c.h.b16 %v1884
      %v2057 = vunpack.c.l.b16 %v1885
      %v2058 = vunpack.c.h.b16 %v1885
      %v2059 = vunpack.c.l.b16 %v1886
      %v2060 = vunpack.c.h.b16 %v1886
      %v2061 = vunpack.c.l.b16 %v1887
      %v2062 = vunpack.c.h.b16 %v1887
      %v2063 = vunpack.c.l.b16 %v1888
      %v2064 = vunpack.c.h.b16 %v1888
      %v2065 = vunpack.c.l.b16 %v1889
      %v2066 = vunpack.c.h.b16 %v1889
      %v2067 = vunpack.c.l.b16 %v1890
      %v2068 = vunpack.c.h.b16 %v1890
      %v2069 = vunpack.c.l.b16 %v1891
      %v2070 = vunpack.c.h.b16 %v1891
      %v2071 = vunpack.c.l.b16 %v1892
      %v2072 = vunpack.c.h.b16 %v1892
      %v2073 = vunpack.c.l.b16 %v1893
      %v2074 = vunpack.c.h.b16 %v1893
      %v2075 = vunpack.c.l.b16 %v1894
      %v2076 = vunpack.c.h.b16 %v1894
      %v2077 = vunpack.c.l.b16 %v1895
      %v2078 = vunpack.c.h.b16 %v1895
      %v2079 = vunpack.c.l.b16 %v1896
      %v2080 = vunpack.c.h.b16 %v1896
      %v2081 = vunpack.c.l.b16 %v1897
      %v2082 = vunpack.c.h.b16 %v1897
      %v2083 = vunpack.c.l.b16 %v1898
      %v2084 = vunpack.c.h.b16 %v1898
      %v2085 = vunpack.c.l.b16 %v1899
      %v2086 = vunpack.c.h.b16 %v1899
      %v2087 = vunpack.c.l.b16 %v1900
      %v2088 = vunpack.c.h.b16 %v1900
      %v2089 = vunpack.c.l.b16 %v1901
      %v2090 = vunpack.c.h.b16 %v1901
      %v2091 = vunpack.c.l.b16 %v1902
      %v2092 = vunpack.c.h.b16 %v1902
      %v2093 = vunpack.c.l.b16 %v1903
      %v2094 = vunpack.c.h.b16 %v1903
      %v2095 = vunpack.c.l.b16 %v1904
      %v2096 = vunpack.c.h.b16 %v1904
      %v2097 = vpack.c.b16 %v1969, %v1969
      %v2098 = vpack.c.b16 %v1970, %v1970
      %v2099 = vpack.c.b16 %v1971, %v1971
      %v2100 = vpack.c.b16 %v1972, %v1972
      %v2101 = vpack.c.b16 %v1973, %v1973
      %v2102 = vpack.c.b16 %v1974, %v1974
      %v2103 = vpack.c.b16 %v1975, %v1975
      %v2104 = vpack.c.b16 %v1976, %v1976
      %v2105 = vpack.c.b16 %v1977, %v1977
      %v2106 = vpack.c.b16 %v1978, %v1978
      %v2107 = vpack.c.b16 %v1979, %v1979
      %v2108 = vpack.c.b16 %v1980, %v1980
      %v2109 = vpack.c.b16 %v1981, %v1981
      %v2110 = vpack.c.b16 %v1982, %v1982
      %v2111 = vpack.c.b16 %v1983, %v1983
      %v2112 = vpack.c.b16 %v1984, %v1984
      %v2113 = vpack.c.b16 %v1985, %v1985
      %v2114 = vpack.c.b16 %v1986, %v1986
      %v2115 = vpack.c.b16 %v1987, %v1987
      %v2116 = vpack.c.b16 %v1988, %v1988
      %v2117 = vpack.c.b16 %v1989, %v1989
      %v2118 = vpack.c.b16 %v1990, %v1990
      %v2119 = vpack.c.b16 %v1991, %v1991
      %v2120 = vpack.c.b16 %v1992, %v1992
      %v2121 = vpack.c.b16 %v1993, %v1993
      %v2122 = vpack.c.b16 %v1994, %v1994
      %v2123 = vpack.c.b16 %v1995, %v1995
      %v2124 = vpack.c.b16 %v1996, %v1996
      %v2125 = vpack.c.b16 %v1997, %v1997
      %v2126 = vpack.c.b16 %v1998, %v1998
      %v2127 = vpack.c.b16 %v1999, %v1999
      %v2128 = vpack.c.b16 %v2000, %v2000
      %v2129 = vpack.c.b16 %v2001, %v2001
      %v2130 = vpack.c.b16 %v2002, %v2002
      %v2131 = vpack.c.b16 %v2003, %v2003
      %v2132 = vpack.c.b16 %v2004, %v2004
      %v2133 = vpack.c.b16 %v2005, %v2005
      %v2134 = vpack.c.b16 %v2006, %v2006
      %v2135 = vpack.c.b16 %v2007, %v2007
      %v2136 = vpack.c.b16 %v2008, %v2008
      %v2137 = vpack.c.b16 %v2009, %v2009
      %v2138 = vpack.c.b16 %v2010, %v2010
      %v2139 = vpack.c.b16 %v2011, %v2011
      %v2140 = vpack.c.b16 %v2012, %v2012
      %v2141 = vpack.c.b16 %v2013, %v2013
      %v2142 = vpack.c.b16 %v2014, %v2014
      %v2143 = vpack.c.b16 %v2015, %v2015
      %v2144 = vpack.c.b16 %v2016, %v2016
      %v2145 = vpack.c.b16 %v2017, %v2017
      %v2146 = vpack.c.b16 %v2018, %v2018
      %v2147 = vpack.c.b16 %v2019, %v2019
      %v2148 = vpack.c.b16 %v2020, %v2020
      %v2149 = vpack.c.b16 %v2021, %v2021
      %v2150 = vpack.c.b16 %v2022, %v2022
      %v2151 = vpack.c.b16 %v2023, %v2023
      %v2152 = vpack.c.b16 %v2024, %v2024
      %v2153 = vpack.c.b16 %v2025, %v2025
      %v2154 = vpack.c.b16 %v2026, %v2026
      %v2155 = vpack.c.b16 %v2027, %v2027
      %v2156 = vpack.c.b16 %v2028, %v2028
      %v2157 = vpack.c.b16 %v2029, %v2029
      %v2158 = vpack.c.b16 %v2030, %v2030
      %v2159 = vpack.c.b16 %v2031, %v2031
      %v2160 = vpack.c.b16 %v2032, %v2032
      %v2161 = vpack.c.b16 %v2033, %v2033
      %v2162 = vpack.c.b16 %v2034, %v2034
      %v2163 = vpack.c.b16 %v2035, %v2035
      %v2164 = vpack.c.b16 %v2036, %v2036
      %v2165 = vpack.c.b16 %v2037, %v2037
      %v2166 = vpack.c.b16 %v2038, %v2038
      %v2167 = vpack.c.b16 %v2039, %v2039
      %v2168 = vpack.c.b16 %v2040, %v2040
      %v2169 = vpack.c.b16 %v2041, %v2041
      %v2170 = vpack.c.b16 %v2042, %v2042
      %v2171 = vpack.c.b16 %v2043, %v2043
      %v2172 = vpack.c.b16 %v2044, %v2044
      %v2173 = vpack.c.b16 %v2045, %v2045
      %v2174 = vpack.c.b16 %v2046, %v2046
      %v2175 = vpack.c.b16 %v2047, %v2047
      %v2176 = vpack.c.b16 %v2048, %v2048
      %v2177 = vpack.c.b16 %v2049, %v2049
      %v2178 = vpack.c.b16 %v2050, %v2050
      %v2179 = vpack.c.b16 %v2051, %v2051
      %v2180 = vpack.c.b16 %v2052, %v2052
      %v2181 = vpack.c.b16 %v2053, %v2053
      %v2182 = vpack.c.b16 %v2054, %v2054
      %v2183 = vpack.c.b16 %v2055, %v2055
      %v2184 = vpack.c.b16 %v2056, %v2056
      %v2185 = vpack.c.b16 %v2057, %v2057
      %v2186 = vpack.c.b16 %v2058, %v2058
      %v2187 = vpack.c.b16 %v2059, %v2059
      %v2188 = vpack.c.b16 %v2060, %v2060
      %v2189 = vpack.c.b16 %v2061, %v2061
      %v2190 = vpack.c.b16 %v2062, %v2062
      %v2191 = vpack.c.b16 %v2063, %v2063
      %v2192 = vpack.c.b16 %v2064, %v2064
      %v2193 = vpack.c.b16 %v2065, %v2065
      %v2194 = vpack.c.b16 %v2066, %v2066
      %v2195 = vpack.c.b16 %v2067, %v2067
      %v2196 = vpack.c.b16 %v2068, %v2068
      %v2197 = vpack.c.b16 %v2069, %v2069
      %v2198 = vpack.c.b16 %v2070, %v2070
      %v2199 = vpack.c.b16 %v2071, %v2071
      %v2200 = vpack.c.b16 %v2072, %v2072
      %v2201 = vpack.c.b16 %v2073, %v2073
      %v2202 = vpack.c.b16 %v2074, %v2074
      %v2203 = vpack.c.b16 %v2075, %v2075
      %v2204 = vpack.c.b16 %v2076, %v2076
      %v2205 = vpack.c.b16 %v2077, %v2077
      %v2206 = vpack.c.b16 %v2078, %v2078
      %v2207 = vpack.c.b16 %v2079, %v2079
      %v2208 = vpack.c.b16 %v2080, %v2080
      %v2209 = vpack.c.b16 %v2081, %v2081
      %v2210 = vpack.c.b16 %v2082, %v2082
      %v2211 = vpack.c.b16 %v2083, %v2083
      %v2212 = vpack.c.b16 %v2084, %v2084
      %v2213 = vpack.c.b16 %v2085, %v2085
      %v2214 = vpack.c.b16 %v2086, %v2086
      %v2215 = vpack.c.b16 %v2087, %v2087
      %v2216 = vpack.c.b16 %v2088, %v2088
      %v2217 = vpack.c.b16 %v2089, %v2089
      %v2218 = vpack.c.b16 %v2090, %v2090
      %v2219 = vpack.c.b16 %v2091, %v2091
      %v2220 = vpack.c.b16 %v2092, %v2092
      %v2221 = vpack.c.b16 %v2093, %v2093
      %v2222 = vpack.c.b16 %v2094, %v2094
      %v2223 = vpack.c.b16 %v2095, %v2095
      %v2224 = vpack.c.b16 %v2096, %v2096
      %vm2353 = vcmask 519168
      %2354 = vst.msk [vmem:[%s185] sm:$0xf] %vm2353, %v2097
      %2355 = vst.msk [vmem:[%s185 + $0x4] sm:$0xf] %vm2353, %v2098
      %2356 = vst.msk [vmem:[%s185 + $0x8] sm:$0xf] %vm2353, %v2099
      %2357 = vst.msk [vmem:[%s185 + $0xc] sm:$0xf] %vm2353, %v2100
      %2358 = vst.msk [vmem:[%s185 + $0x10] sm:$0xf] %vm2353, %v2101
      %2359 = vst.msk [vmem:[%s185 + $0x14] sm:$0xf] %vm2353, %v2102
      %2360 = vst.msk [vmem:[%s185 + $0x18] sm:$0xf] %vm2353, %v2103
      %2361 = vst.msk [vmem:[%s185 + $0x1c] sm:$0xf] %vm2353, %v2104
      %2362 = vst.msk [vmem:[%s185 + $0x20] sm:$0xf] %vm2353, %v2105
      %2363 = vst.msk [vmem:[%s185 + $0x24] sm:$0xf] %vm2353, %v2106
      %2364 = vst.msk [vmem:[%s185 + $0x28] sm:$0xf] %vm2353, %v2107
      %2365 = vst.msk [vmem:[%s185 + $0x2c] sm:$0xf] %vm2353, %v2108
      %2366 = vst.msk [vmem:[%s185 + $0x30] sm:$0xf] %vm2353, %v2109
      %2367 = vst.msk [vmem:[%s185 + $0x34] sm:$0xf] %vm2353, %v2110
      %2368 = vst.msk [vmem:[%s185 + $0x38] sm:$0xf] %vm2353, %v2111
      %2369 = vst.msk [vmem:[%s185 + $0x3c] sm:$0xf] %vm2353, %v2112
      %2370 = vst.msk [vmem:[%s185 + $0x40] sm:$0xf] %vm2353, %v2113
      %2371 = vst.msk [vmem:[%s185 + $0x44] sm:$0xf] %vm2353, %v2114
      %2372 = vst.msk [vmem:[%s185 + $0x48] sm:$0xf] %vm2353, %v2115
      %2373 = vst.msk [vmem:[%s185 + $0x4c] sm:$0xf] %vm2353, %v2116
      %2374 = vst.msk [vmem:[%s185 + $0x50] sm:$0xf] %vm2353, %v2117
      %2375 = vst.msk [vmem:[%s185 + $0x54] sm:$0xf] %vm2353, %v2118
      %2376 = vst.msk [vmem:[%s185 + $0x58] sm:$0xf] %vm2353, %v2119
      %2377 = vst.msk [vmem:[%s185 + $0x5c] sm:$0xf] %vm2353, %v2120
      %2378 = vst.msk [vmem:[%s185 + $0x60] sm:$0xf] %vm2353, %v2121
      %2379 = vst.msk [vmem:[%s185 + $0x64] sm:$0xf] %vm2353, %v2122
      %2380 = vst.msk [vmem:[%s185 + $0x68] sm:$0xf] %vm2353, %v2123
      %2381 = vst.msk [vmem:[%s185 + $0x6c] sm:$0xf] %vm2353, %v2124
      %2382 = vst.msk [vmem:[%s185 + $0x70] sm:$0xf] %vm2353, %v2125
      %2383 = vst.msk [vmem:[%s185 + $0x74] sm:$0xf] %vm2353, %v2126
      %2384 = vst.msk [vmem:[%s185 + $0x78] sm:$0xf] %vm2353, %v2127
      %2385 = vst.msk [vmem:[%s185 + $0x7c] sm:$0xf] %vm2353, %v2128
      %2386 = vst.msk [vmem:[%s185 + $0x80] sm:$0xf] %vm2353, %v2129
      %2387 = vst.msk [vmem:[%s185 + $0x84] sm:$0xf] %vm2353, %v2130
      %2388 = vst.msk [vmem:[%s185 + $0x88] sm:$0xf] %vm2353, %v2131
      %2389 = vst.msk [vmem:[%s185 + $0x8c] sm:$0xf] %vm2353, %v2132
      %2390 = vst.msk [vmem:[%s185 + $0x90] sm:$0xf] %vm2353, %v2133
      %2391 = vst.msk [vmem:[%s185 + $0x94] sm:$0xf] %vm2353, %v2134
      %2392 = vst.msk [vmem:[%s185 + $0x98] sm:$0xf] %vm2353, %v2135
      %2393 = vst.msk [vmem:[%s185 + $0x9c] sm:$0xf] %vm2353, %v2136
      %2394 = vst.msk [vmem:[%s185 + $0xa0] sm:$0xf] %vm2353, %v2137
      %2395 = vst.msk [vmem:[%s185 + $0xa4] sm:$0xf] %vm2353, %v2138
      %2396 = vst.msk [vmem:[%s185 + $0xa8] sm:$0xf] %vm2353, %v2139
      %2397 = vst.msk [vmem:[%s185 + $0xac] sm:$0xf] %vm2353, %v2140
      %2398 = vst.msk [vmem:[%s185 + $0xb0] sm:$0xf] %vm2353, %v2141
      %2399 = vst.msk [vmem:[%s185 + $0xb4] sm:$0xf] %vm2353, %v2142
      %2400 = vst.msk [vmem:[%s185 + $0xb8] sm:$0xf] %vm2353, %v2143
      %2401 = vst.msk [vmem:[%s185 + $0xbc] sm:$0xf] %vm2353, %v2144
      %2402 = vst.msk [vmem:[%s185 + $0xc0] sm:$0xf] %vm2353, %v2145
      %2403 = vst.msk [vmem:[%s185 + $0xc4] sm:$0xf] %vm2353, %v2146
      %2404 = vst.msk [vmem:[%s185 + $0xc8] sm:$0xf] %vm2353, %v2147
      %2405 = vst.msk [vmem:[%s185 + $0xcc] sm:$0xf] %vm2353, %v2148
      %2406 = vst.msk [vmem:[%s185 + $0xd0] sm:$0xf] %vm2353, %v2149
      %2407 = vst.msk [vmem:[%s185 + $0xd4] sm:$0xf] %vm2353, %v2150
      %2408 = vst.msk [vmem:[%s185 + $0xd8] sm:$0xf] %vm2353, %v2151
      %2409 = vst.msk [vmem:[%s185 + $0xdc] sm:$0xf] %vm2353, %v2152
      %2410 = vst.msk [vmem:[%s185 + $0xe0] sm:$0xf] %vm2353, %v2153
      %2411 = vst.msk [vmem:[%s185 + $0xe4] sm:$0xf] %vm2353, %v2154
      %2412 = vst.msk [vmem:[%s185 + $0xe8] sm:$0xf] %vm2353, %v2155
      %2413 = vst.msk [vmem:[%s185 + $0xec] sm:$0xf] %vm2353, %v2156
      %2414 = vst.msk [vmem:[%s185 + $0xf0] sm:$0xf] %vm2353, %v2157
      %2415 = vst.msk [vmem:[%s185 + $0xf4] sm:$0xf] %vm2353, %v2158
      %2416 = vst.msk [vmem:[%s185 + $0xf8] sm:$0xf] %vm2353, %v2159
      %2417 = vst.msk [vmem:[%s185 + $0xfc] sm:$0xf] %vm2353, %v2160
      %2418 = vst.msk [vmem:[%s185 + $0x100] sm:$0xf] %vm2353, %v2161
      %2419 = vst.msk [vmem:[%s185 + $0x104] sm:$0xf] %vm2353, %v2162
      %2420 = vst.msk [vmem:[%s185 + $0x108] sm:$0xf] %vm2353, %v2163
      %2421 = vst.msk [vmem:[%s185 + $0x10c] sm:$0xf] %vm2353, %v2164
      %2422 = vst.msk [vmem:[%s185 + $0x110] sm:$0xf] %vm2353, %v2165
      %2423 = vst.msk [vmem:[%s185 + $0x114] sm:$0xf] %vm2353, %v2166
      %2424 = vst.msk [vmem:[%s185 + $0x118] sm:$0xf] %vm2353, %v2167
      %2425 = vst.msk [vmem:[%s185 + $0x11c] sm:$0xf] %vm2353, %v2168
      %2426 = vst.msk [vmem:[%s185 + $0x120] sm:$0xf] %vm2353, %v2169
      %2427 = vst.msk [vmem:[%s185 + $0x124] sm:$0xf] %vm2353, %v2170
      %2428 = vst.msk [vmem:[%s185 + $0x128] sm:$0xf] %vm2353, %v2171
      %2429 = vst.msk [vmem:[%s185 + $0x12c] sm:$0xf] %vm2353, %v2172
      %2430 = vst.msk [vmem:[%s185 + $0x130] sm:$0xf] %vm2353, %v2173
      %2431 = vst.msk [vmem:[%s185 + $0x134] sm:$0xf] %vm2353, %v2174
      %2432 = vst.msk [vmem:[%s185 + $0x138] sm:$0xf] %vm2353, %v2175
      %2433 = vst.msk [vmem:[%s185 + $0x13c] sm:$0xf] %vm2353, %v2176
      %2434 = vst.msk [vmem:[%s185 + $0x140] sm:$0xf] %vm2353, %v2177
      %2435 = vst.msk [vmem:[%s185 + $0x144] sm:$0xf] %vm2353, %v2178
      %2436 = vst.msk [vmem:[%s185 + $0x148] sm:$0xf] %vm2353, %v2179
      %2437 = vst.msk [vmem:[%s185 + $0x14c] sm:$0xf] %vm2353, %v2180
      %2438 = vst.msk [vmem:[%s185 + $0x150] sm:$0xf] %vm2353, %v2181
      %2439 = vst.msk [vmem:[%s185 + $0x154] sm:$0xf] %vm2353, %v2182
      %2440 = vst.msk [vmem:[%s185 + $0x158] sm:$0xf] %vm2353, %v2183
      %2441 = vst.msk [vmem:[%s185 + $0x15c] sm:$0xf] %vm2353, %v2184
      %2442 = vst.msk [vmem:[%s185 + $0x160] sm:$0xf] %vm2353, %v2185
      %2443 = vst.msk [vmem:[%s185 + $0x164] sm:$0xf] %vm2353, %v2186
      %2444 = vst.msk [vmem:[%s185 + $0x168] sm:$0xf] %vm2353, %v2187
      %2445 = vst.msk [vmem:[%s185 + $0x16c] sm:$0xf] %vm2353, %v2188
      %2446 = vst.msk [vmem:[%s185 + $0x170] sm:$0xf] %vm2353, %v2189
      %2447 = vst.msk [vmem:[%s185 + $0x174] sm:$0xf] %vm2353, %v2190
      %2448 = vst.msk [vmem:[%s185 + $0x178] sm:$0xf] %vm2353, %v2191
      %2449 = vst.msk [vmem:[%s185 + $0x17c] sm:$0xf] %vm2353, %v2192
      %2450 = vst.msk [vmem:[%s185 + $0x180] sm:$0xf] %vm2353, %v2193
      %2451 = vst.msk [vmem:[%s185 + $0x184] sm:$0xf] %vm2353, %v2194
      %2452 = vst.msk [vmem:[%s185 + $0x188] sm:$0xf] %vm2353, %v2195
      %2453 = vst.msk [vmem:[%s185 + $0x18c] sm:$0xf] %vm2353, %v2196
      %2454 = vst.msk [vmem:[%s185 + $0x190] sm:$0xf] %vm2353, %v2197
      %2455 = vst.msk [vmem:[%s185 + $0x194] sm:$0xf] %vm2353, %v2198
      %2456 = vst.msk [vmem:[%s185 + $0x198] sm:$0xf] %vm2353, %v2199
      %2457 = vst.msk [vmem:[%s185 + $0x19c] sm:$0xf] %vm2353, %v2200
      %2458 = vst.msk [vmem:[%s185 + $0x1a0] sm:$0xf] %vm2353, %v2201
      %2459 = vst.msk [vmem:[%s185 + $0x1a4] sm:$0xf] %vm2353, %v2202
      %2460 = vst.msk [vmem:[%s185 + $0x1a8] sm:$0xf] %vm2353, %v2203
      %2461 = vst.msk [vmem:[%s185 + $0x1ac] sm:$0xf] %vm2353, %v2204
      %2462 = vst.msk [vmem:[%s185 + $0x1b0] sm:$0xf] %vm2353, %v2205
      %2463 = vst.msk [vmem:[%s185 + $0x1b4] sm:$0xf] %vm2353, %v2206
      %2464 = vst.msk [vmem:[%s185 + $0x1b8] sm:$0xf] %vm2353, %v2207
      %2465 = vst.msk [vmem:[%s185 + $0x1bc] sm:$0xf] %vm2353, %v2208
      %2466 = vst.msk [vmem:[%s185 + $0x1c0] sm:$0xf] %vm2353, %v2209
      %2467 = vst.msk [vmem:[%s185 + $0x1c4] sm:$0xf] %vm2353, %v2210
      %2468 = vst.msk [vmem:[%s185 + $0x1c8] sm:$0xf] %vm2353, %v2211
      %2469 = vst.msk [vmem:[%s185 + $0x1cc] sm:$0xf] %vm2353, %v2212
      %2470 = vst.msk [vmem:[%s185 + $0x1d0] sm:$0xf] %vm2353, %v2213
      %2471 = vst.msk [vmem:[%s185 + $0x1d4] sm:$0xf] %vm2353, %v2214
      %2472 = vst.msk [vmem:[%s185 + $0x1d8] sm:$0xf] %vm2353, %v2215
      %2473 = vst.msk [vmem:[%s185 + $0x1dc] sm:$0xf] %vm2353, %v2216
      %2474 = vst.msk [vmem:[%s185 + $0x1e0] sm:$0xf] %vm2353, %v2217
      %2475 = vst.msk [vmem:[%s185 + $0x1e4] sm:$0xf] %vm2353, %v2218
      %2476 = vst.msk [vmem:[%s185 + $0x1e8] sm:$0xf] %vm2353, %v2219
      %2477 = vst.msk [vmem:[%s185 + $0x1ec] sm:$0xf] %vm2353, %v2220
      %2478 = vst.msk [vmem:[%s185 + $0x1f0] sm:$0xf] %vm2353, %v2221
      %2479 = vst.msk [vmem:[%s185 + $0x1f4] sm:$0xf] %vm2353, %v2222
      %2480 = vst.msk [vmem:[%s185 + $0x1f8] sm:$0xf] %vm2353, %v2223
      %2481 = vst.msk [vmem:[%s185 + $0x1fc] sm:$0xf] %vm2353, %v2224
      %s2482 = smul.u32 128, %s17
      %p2483 = scmp.lt.s32.totalorder %s2482, 255
      %s2484 = scalar_select %p2483, %s2482, 255
      %p2485 = scmp.lt.s32.totalorder %s18, 0
      %s2486 = scalar_select %p2485, %s18, 0
      %s2487 = sadd.s32 %s2486, %s2484
      %s2488 = smul.addr %s2487, 4
      %s2489 = scalar_lea.vmem %s2, %s2488
      // Predicated region
      $region29: #{tpu_custom_call.1} parent=27 // pred_check
        %p2490 = pneg %p97
      $region30: #{tpu_custom_call.1} parent=27 // pred_check_branch
        %2492 = sbr.rel (%p2490) target = $region32
      $region31: #{tpu_custom_call.1} parent=27 // pred_region
        %s2493 = smul.u32 128, %s17
      $region32: #{tpu_custom_call.1} parent=27 // pred_fallthru
        _
    $region28: #{tpu_custom_call.1} parent=5 // pred_fallthru
      _
    %p2494 = scmp.le.s32.totalorder 2, %s8
    // Predicated region
    $region33: #{tpu_custom_call.1} parent=5 // pred_check
      %p2495 = pneg %p2494
    $region34: #{tpu_custom_call.1} parent=5 // pred_check_branch
      %2497 = sbr.rel (%p2495) target = $region36
    $region35: #{tpu_custom_call.1} parent=5 // pred_region
      %s2498 = ssub.s32 %s8, 2
      // Predicated region
      $region37: #{tpu_custom_call.1} parent=35 // pred_check
        %p2499 = pneg %p103
      $region38: #{tpu_custom_call.1} parent=35 // pred_check_branch
        %2501 = sbr.rel (%p2499) target = $region40
      $region39: #{tpu_custom_call.1} parent=35 // pred_region
        %s2502 = smul.u32 128, %s19
        %p2503 = scmp.lt.s32.totalorder %s2502, 255
        %s2504 = scalar_select %p2503, %s2502, 255
        %p2505 = scmp.lt.s32.totalorder %s20, 0
        %s2506 = scalar_select %p2505, %s20, 0
        %s2507 = sadd.s32 %s2506, %s2504
        %s2508 = smul.addr %s2507, 4
        %s2509 = scalar_lea.vmem %s2, %s2508
      $region40: #{tpu_custom_call.1} parent=35 // pred_fallthru
        _
    $region36: #{tpu_custom_call.1} parent=5 // pred_fallthru
      _
  $region6: #{tpu_custom_call.1} parent=0 // loop_footer
    %s12 = sadd.s32 1, %s8
  $region7: #{tpu_custom_call.1} parent=0 // loop_footer_branch
    %7 = sbr.rel target = $region3
  $region8: #{tpu_custom_call.1} parent=0 // loop_exit
    _

</llo_original>
